<compile_context>
chip_gen: v7x
topology: tpu7x:2x2x1
jax: 0.10.0
libtpu: 0.0.40
codegen_flags: <defaults>
</compile_context>

<pallas_src>
import functools

import jax
import jax.numpy as jnp
from jax import lax
from jax.experimental import pallas as pl
from jax.experimental.pallas import tpu as pltpu


def _round_up(x, m):
    return ((x + m - 1) // m) * m


def _vmem_limit_bytes():
    """Generation-aware scoped-VMEM request.

    v5e / v6e have 128 MiB of physical VMEM per TensorCore, v7x only 64 MiB.
    Request at most half the physical capacity (never more than 64 MiB) so
    the kernel cannot OOM / spill on any generation; fall back to the
    v7x-safe 32 MiB if the hardware query is unavailable.
    """
    try:
        cap = int(pltpu.get_tpu_info().vmem_capacity_bytes)
    except Exception:  # pragma: no cover - conservative fallback
        cap = 64 * 1024 * 1024
    return int(min(cap // 2, 64 * 1024 * 1024))


def _choose_tile_hw(hw, c, k, vmem_limit, max_tile_hw, batch):
    """Pick the spatial (lane) tile size T.

    Cost model (f32, transposed [C, T] / [K, T] layout; T is the lane axis so
    the big slabs have no 64->128 lane padding):
      per lane-column bytes:
        x in + q out blocks, double-buffered:            2 * 2 * C * 4
        extra [C, T] temporaries (q result, diff):       2 * C * 4
        live [K, T] intermediates (xw/dist/cand/enc):    4 * K * 4
        idx / sqerr outputs (sublane-padded to 8), x2:   4 * 8 * 4
      plus the grid-invariant codebook inputs (w, w^T, 0.5|w|^2),
      double-buffered and lane-padded.
    """
    per_col = 4 * (6 * c + 4 * k) + 128
    const = 2 * 4 * (k * _round_up(c, 128)      # w   [K, C]
                     + c * _round_up(k, 128)    # w^T [C, K]
                     + k * 128)                 # 0.5|w|^2 [K, 1]
    budget = int(0.75 * vmem_limit) - const
    cap = max(128, (budget // per_col) // 128 * 128)
    cap = min(cap, max(128, max_tile_hw), 8192)

    hw_pad0 = _round_up(hw, 128)
    n_j = pl.cdiv(hw_pad0, cap)
    # v7x megacore: guarantee >= 2 grid steps so both TensorCores get work
    # (dimension_semantics "parallel" is the only way work is sharded across
    # them).  No effect on v5e / v6e which have a single TensorCore.
    if batch * n_j < 2 and hw_pad0 >= 256:
        n_j = 2
    tile = _round_up(pl.cdiv(hw_pad0, n_j), 128)
    hw_pad = n_j * tile
    return tile, hw_pad, n_j


def _vq_kernel(x_ref, w_ref, wt_ref, w2h_ref, idx_ref, q_ref, err_ref,
               *, dist_in_bf16):
    """One [C, T] NCHW column tile of vector quantization.

    x_ref:   [1, C, T]  input columns (channels-major, NCHW native)
    w_ref:   [K, C]     codebook (constant index_map -> fetched once)
    wt_ref:  [C, K]     codebook transpose (for the one-hot gather matmul)
    w2h_ref: [K, 1]     0.5 * |w|^2 per code (grid-invariant)
    idx_ref: [1, 1, T]  int32 nearest-code index per column (lane-dense)
    q_ref:   [1, C, T]  quantized columns, NCHW native
    err_ref: [1, 1, T]  sum_c (x - q)^2 per column (commitment-loss partials)
    """
    x_ct = x_ref[0]                      # [C, T] f32
    w = w_ref[...]                       # [K, C] f32
    k = w.shape[0]
    t = x_ct.shape[1]

    # Surrogate distance 0.5*|w|^2 - x.w: argmin-equivalent to the full L2
    # (the |x|^2 term is a per-column constant, the 0.5 scaling is positive).
    # Computed directly in the [K, T] orientation so the argmin is lane-dense
    # and the quantized result comes out NCHW-native.
    if dist_in_bf16:
        xw = lax.dot_general(w.astype(jnp.bfloat16), x_ct.astype(jnp.bfloat16),
                             (((1,), (0,)), ((), ())),
                             preferred_element_type=jnp.float32)   # [K, T]
    else:
        xw = lax.dot_general(w, x_ct, (((1,), (0,)), ((), ())),
                             preferred_element_type=jnp.float32)   # [K, T]
    dist = w2h_ref[...] - xw                                       # [K, T]

    # argmin over codes with first-occurrence tie-breaking (torch.argmin).
    row = lax.broadcasted_iota(jnp.int32, (k, t), 0)               # [K, T]
    dmin = jnp.min(dist, axis=0, keepdims=True)                    # [1, T]
    cand = jnp.where(dist == dmin, row, jnp.int32(k))              # [K, T]
    idx = jnp.min(cand, axis=0, keepdims=True)                     # [1, T]
    idx_ref[0] = idx

    # One-hot never leaves VMEM; the "gather" is an MXU matmul against the
    # f32 pre-transposed codebook, so quantized values are exact.
    enc_t = (row == idx).astype(jnp.float32)                       # [K, T]
    q_ct = lax.dot_general(wt_ref[...], enc_t, (((1,), (0,)), ((), ())),
                           preferred_element_type=jnp.float32)     # [C, T]
    q_ref[0] = q_ct

    # Commitment-loss partials: the diff is already in vregs here, so the
    # wrapper never re-reads x / quantized from HBM for the MSE.
    diff = x_ct - q_ct
    err_ref[0] = jnp.sum(diff * diff, axis=0, keepdims=True)       # [1, T]


def vq_pallas(inputs_nchw, embedding_weight, *, max_tile_hw=8192,
              dist_in_bf16=False):
    """NCHW-native vector quantization.

    inputs_nchw:      [B, C, H, W] f32 with C == embedding_dim
    embedding_weight: [K, C] f32
    Returns (idx [B*H*W] int32 in NHWC row order, quantized [B, C, H, W] f32,
             sq_err_sum scalar f32 = sum over all positions of |x - q|^2).
    """
    b, c, h, w_sp = inputs_nchw.shape
    k, d = embedding_weight.shape
    assert c == d, (c, d)
    hw = h * w_sp

    vmem_limit = _vmem_limit_bytes()
    tile, hw_pad, n_j = _choose_tile_hw(hw, c, k, vmem_limit, max_tile_hw, b)

    # Free reshape (no transpose): the kernel consumes [C, tile] column
    # blocks directly, so the wrapper-side NCHW<->NHWC transposes disappear.
    x3 = inputs_nchw.reshape(b, c, hw)
    if hw_pad != hw:
        # TODO(synk): for lane-aligned spatial extents (H*W % 128 == 0, the
        # common VQ-VAE case) this pad is a no-op; otherwise it costs one
        # extra HBM pass for the input only.
        x3 = jnp.pad(x3, ((0, 0), (0, 0), (0, hw_pad - hw)))

    w = embedding_weight.astype(jnp.float32)
    wt = w.T                                              # tiny [C, K]
    w2h = (0.5 * jnp.sum(w * w, axis=1))[:, None]         # [K, 1]

    kernel = functools.partial(_vq_kernel, dist_in_bf16=dist_in_bf16)

    idx3, q3, err3 = pl.pallas_call(
        kernel,
        out_shape=(
            jax.ShapeDtypeStruct((b, 1, hw_pad), jnp.int32),
            jax.ShapeDtypeStruct((b, c, hw_pad), jnp.float32),
            jax.ShapeDtypeStruct((b, 1, hw_pad), jnp.float32),
        ),
        grid_spec=pltpu.PrefetchScalarGridSpec(
            num_scalar_prefetch=0,
            grid=(b, n_j),
            in_specs=[
                pl.BlockSpec((1, c, tile), lambda bi, j: (bi, 0, j)),  # x
                pl.BlockSpec((k, c), lambda bi, j: (0, 0)),            # w
                pl.BlockSpec((c, k), lambda bi, j: (0, 0)),            # w^T
                pl.BlockSpec((k, 1), lambda bi, j: (0, 0)),            # 0.5|w|^2
            ],
            out_specs=[
                pl.BlockSpec((1, 1, tile), lambda bi, j: (bi, 0, j)),  # idx
                pl.BlockSpec((1, c, tile), lambda bi, j: (bi, 0, j)),  # q
                pl.BlockSpec((1, 1, tile), lambda bi, j: (bi, 0, j)),  # err
            ],
        ),
        compiler_params=pltpu.CompilerParams(
            dimension_semantics=("parallel", "parallel"),
            vmem_limit_bytes=vmem_limit,
        ),
    )(x3, w, wt, w2h)

    idx = idx3[:, 0, :hw].reshape(-1)                  # NHWC row order
    quantized = q3[:, :, :hw].reshape(b, c, h, w_sp)   # NCHW, no transpose
    sq_err_sum = jnp.sum(err3[:, 0, :hw])              # padded cols excluded
    return idx, quantized, sq_err_sum


@functools.partial(jax.jit, static_argnames=("commitment_cost", "max_tile_hw",
                                             "dist_in_bf16"))
def vector_quantizer_ema_forward(inputs_nchw, embedding_weight,
                                 commitment_cost=0.25, max_tile_hw=8192,
                                 dist_in_bf16=False):
    """Eval-mode forward of VectorQuantizerEMA.

    inputs_nchw:      [B, C, H, W] with C == embedding_dim
    embedding_weight: [K, C]
    Returns (loss, quantized_nchw, perplexity, encodings).
    """
    b, c, h, w_sp = inputs_nchw.shape
    k, d = embedding_weight.shape
    assert c == d

    x = inputs_nchw.astype(jnp.float32)
    idx, quantized, sq_err_sum = vq_pallas(
        x, embedding_weight.astype(jnp.float32),
        max_tile_hw=max_tile_hw, dist_in_bf16=dist_in_bf16)

    n = b * h * w_sp

    # commitment loss: mse(quantized.detach(), inputs); the partial sums were
    # accumulated inside the kernel so x / quantized are not re-read here.
    e_latent_loss = sq_err_sum / (n * d)
    loss = commitment_cost * e_latent_loss

    # straight-through estimator (forward value == quantized), NCHW-native.
    quantized_st = x + lax.stop_gradient(quantized - x)

    # encodings are part of the module's return signature.
    encodings = jax.nn.one_hot(idx, k, dtype=jnp.float32)          # [N, K]

    # perplexity via a bincount over idx (avoids re-reading the [N, K]
    # one-hot slab just to take its column mean).
    counts = jnp.zeros((k,), jnp.float32).at[idx].add(1.0)
    avg_probs = counts / n
    perplexity = jnp.exp(-jnp.sum(avg_probs * jnp.log(avg_probs + 1e-10)))

    return loss, quantized_st, perplexity, encodings


if __name__ == "__main__":
    num_embeddings = 256    # K
    embedding_dim = 64      # D == channel dim of the NCHW input
    commitment_cost = 0.25

    # Non-multiple-of-128 spatial extent so the lane-padding path is hit.
    B, H, W = 2, 13, 11     # N = B*H*W = 286, H*W = 143 -> padded to 256

    key = jax.random.PRNGKey(0)
    k_x, k_w = jax.random.split(key)
    x = jax.random.normal(k_x, (B, embedding_dim, H, W), dtype=jnp.float32)
    emb_w = jax.random.normal(k_w, (num_embeddings, embedding_dim),
                              dtype=jnp.float32)

    # pure-JAX reference with torch semantics (full L2 distance incl. |x|^2)
    flat = jnp.transpose(x, (0, 2, 3, 1)).reshape(-1, embedding_dim)
    dist_ref = (jnp.sum(flat**2, 1, keepdims=True) + jnp.sum(emb_w**2, 1)
                - 2.0 * flat @ emb_w.T)
    idx_ref = jnp.argmin(dist_ref, axis=1)
    enc_ref = jax.nn.one_hot(idx_ref, num_embeddings, dtype=jnp.float32)
    q_flat_ref = enc_ref @ emb_w
    q_nhwc_ref = q_flat_ref.reshape(B, H, W, embedding_dim)
    q_ref = jnp.transpose(q_nhwc_ref, (0, 3, 1, 2))
    loss_ref = commitment_cost * jnp.mean(
        (q_nhwc_ref - flat.reshape(B, H, W, embedding_dim)) ** 2)
    avg_ref = jnp.mean(enc_ref, axis=0)
    ppl_ref = jnp.exp(-jnp.sum(avg_ref * jnp.log(avg_ref + 1e-10)))

    # f32 distance path (index-compatible with the torch/f32 reference):
    # default large tile (one HW tile per batch) and a forced 128-wide tile
    # (multi-step grid) to exercise both pipeline paths.
    for max_tile in (8192, 128):
        loss, quantized, perplexity, encodings = vector_quantizer_ema_forward(
            x, emb_w, commitment_cost=commitment_cost, max_tile_hw=max_tile)
        jax.block_until_ready((loss, quantized, perplexity, encodings))

        assert encodings.shape == (B * H * W, num_embeddings)
        assert jnp.allclose(encodings, enc_ref)
        assert jnp.allclose(quantized, q_ref, atol=1e-5)
        assert jnp.allclose(loss, loss_ref, rtol=1e-5, atol=1e-5)
        assert jnp.allclose(perplexity, ppl_ref, atol=1e-4)

    # bf16 distance-matmul path (perf option, biggest win on v5e): near-tie
    # indices may legitimately flip vs. the f32 reference, so soft checks.
    loss_b, quant_b, ppl_b, enc_b = vector_quantizer_ema_forward(
        x, emb_w, commitment_cost=commitment_cost, dist_in_bf16=True)
    jax.block_until_ready((loss_b, quant_b, ppl_b, enc_b))
    idx_b = jnp.argmax(enc_b, axis=1)
    agree = jax.device_get(idx_b == idx_ref)
    assert float(agree.mean()) >= 0.95
    q_flat_b = jnp.transpose(quant_b, (0, 2, 3, 1)).reshape(-1, embedding_dim)
    assert jnp.allclose(q_flat_b[agree], q_flat_ref[agree], atol=1e-5)

    print("KERNEL_OK")
</pallas_src>

<mosaic_0001>
module attributes {stable_mosaic.version = 11 : i64} {
  func.func @_vq_kernel(%arg0: i32, %arg1: i32, %arg2: memref<1x64x256xf32, #tpu.memory_space<vmem>>, %arg3: memref<256x64xf32, #tpu.memory_space<vmem>>, %arg4: memref<64x256xf32, #tpu.memory_space<vmem>>, %arg5: memref<256x1xf32, #tpu.memory_space<vmem>>, %arg6: memref<1x1x256xi32, #tpu.memory_space<vmem>>, %arg7: memref<1x64x256xf32, #tpu.memory_space<vmem>>, %arg8: memref<1x1x256xf32, #tpu.memory_space<vmem>>) attributes {dimension_semantics = [#tpu.dimension_semantics<parallel>, #tpu.dimension_semantics<parallel>], iteration_bounds = array<i64: 2, 1>, scalar_prefetch = 0 : i64, scratch_operands = 0 : i64, tpu.core_type = #tpu.core_type<tc>, window_params = [{transform_indices = @transform_0, window_bounds = array<i64: 1, 64, 256>}, {pipeline_mode = #tpu.pipeline_mode<synchronous>, transform_indices = @transform_1, window_bounds = array<i64: 256, 64>}, {pipeline_mode = #tpu.pipeline_mode<synchronous>, transform_indices = @transform_2, window_bounds = array<i64: 64, 256>}, {pipeline_mode = #tpu.pipeline_mode<synchronous>, transform_indices = @transform_3, window_bounds = array<i64: 256, 1>}, {transform_indices = @transform_4, window_bounds = array<i64: 1, 1, 256>}, {transform_indices = @transform_5, window_bounds = array<i64: 1, 64, 256>}, {transform_indices = @transform_6, window_bounds = array<i64: 1, 1, 256>}]} {
    %c0 = arith.constant 0 : index
    %c0_0 = arith.constant 0 : index
    %c0_1 = arith.constant 0 : index
    %0 = vector.load %arg2[%c0, %c0_0, %c0_1] : memref<1x64x256xf32, #tpu.memory_space<vmem>>, vector<1x64x256xf32>
    %1 = vector.shape_cast %0 : vector<1x64x256xf32> to vector<64x256xf32>
    %c0_2 = arith.constant 0 : index
    %c0_3 = arith.constant 0 : index
    %2 = vector.load %arg3[%c0_2, %c0_3] : memref<256x64xf32, #tpu.memory_space<vmem>>, vector<256x64xf32>
    %cst = arith.constant dense<0.000000e+00> : vector<256x256xf32>
    %3 = tpu.matmul %2, %1, %cst {dimension_numbers = #tpu.dot_dimension_numbers<[1], [0], [0], [1], [0, 0, 1, 1], [], []>} : vector<256x64xf32>, vector<64x256xf32>, vector<256x256xf32> -> vector<256x256xf32>
    %c0_4 = arith.constant 0 : index
    %c0_5 = arith.constant 0 : index
    %4 = vector.load %arg5[%c0_4, %c0_5] : memref<256x1xf32, #tpu.memory_space<vmem>>, vector<256x1xf32>
    %5 = vector.broadcast %4 : vector<256x1xf32> to vector<256x256xf32>
    %6 = arith.subf %5, %3 : vector<256x256xf32>
    %7 = tpu.iota {dimensions = array<i32: 0>} : vector<256x256xi32>
    %cst_6 = arith.constant dense<0x7F800000> : vector<256xf32>
    %8 = vector.multi_reduction <minimumf>, %6, %cst_6 [0] : vector<256x256xf32> to vector<256xf32>
    %9 = vector.shape_cast %8 : vector<256xf32> to vector<1x256xf32>
    %10 = vector.broadcast %9 : vector<1x256xf32> to vector<256x256xf32>
    %11 = arith.cmpf oeq, %6, %10 : vector<256x256xf32>
    %c256_i32 = arith.constant 256 : i32
    %12 = vector.broadcast %c256_i32 : i32 to vector<256x256xi32>
    %13 = arith.select %11, %7, %12 : vector<256x256xi1>, vector<256x256xi32>
    %cst_7 = arith.constant dense<2147483647> : vector<256xi32>
    %14 = vector.multi_reduction <minsi>, %13, %cst_7 [0] : vector<256x256xi32> to vector<256xi32>
    %15 = vector.shape_cast %14 : vector<256xi32> to vector<1x256xi32>
    %c0_8 = arith.constant 0 : index
    %c0_9 = arith.constant 0 : index
    %c0_10 = arith.constant 0 : index
    %16 = vector.load %arg6[%c0_8, %c0_9, %c0_10] : memref<1x1x256xi32, #tpu.memory_space<vmem>>, vector<1x1x256xi32>
    %17 = vector.shape_cast %16 : vector<1x1x256xi32> to vector<1x256xi32>
    %18 = vector.shape_cast %15 : vector<1x256xi32> to vector<1x1x256xi32>
    tpu.vector_store %arg6[%c0_8, %c0_9, %c0_10], %18 {strides = array<i32>} : memref<1x1x256xi32, #tpu.memory_space<vmem>>, vector<1x1x256xi32>,
    %19 = vector.broadcast %15 : vector<1x256xi32> to vector<256x256xi32>
    %20 = arith.cmpi eq, %7, %19 : vector<256x256xi32>
    %21 = arith.extui %20 : vector<256x256xi1> to vector<256x256xi32>
    %22 = arith.sitofp %21 : vector<256x256xi32> to vector<256x256xf32>
    %c0_11 = arith.constant 0 : index
    %c0_12 = arith.constant 0 : index
    %23 = vector.load %arg4[%c0_11, %c0_12] : memref<64x256xf32, #tpu.memory_space<vmem>>, vector<64x256xf32>
    %cst_13 = arith.constant dense<0.000000e+00> : vector<64x256xf32>
    %24 = tpu.matmul %23, %22, %cst_13 {dimension_numbers = #tpu.dot_dimension_numbers<[1], [0], [0], [1], [0, 0, 1, 1], [], []>} : vector<64x256xf32>, vector<256x256xf32>, vector<64x256xf32> -> vector<64x256xf32>
    %c0_14 = arith.constant 0 : index
    %c0_15 = arith.constant 0 : index
    %c0_16 = arith.constant 0 : index
    %25 = vector.load %arg7[%c0_14, %c0_15, %c0_16] : memref<1x64x256xf32, #tpu.memory_space<vmem>>, vector<1x64x256xf32>
    %26 = vector.shape_cast %25 : vector<1x64x256xf32> to vector<64x256xf32>
    %27 = vector.shape_cast %24 : vector<64x256xf32> to vector<1x64x256xf32>
    tpu.vector_store %arg7[%c0_14, %c0_15, %c0_16], %27 {strides = array<i32>} : memref<1x64x256xf32, #tpu.memory_space<vmem>>, vector<1x64x256xf32>,
    %28 = arith.subf %1, %24 : vector<64x256xf32>
    %29 = arith.mulf %28, %28 : vector<64x256xf32>
    %cst_17 = arith.constant dense<0.000000e+00> : vector<256xf32>
    %30 = vector.multi_reduction <add>, %29, %cst_17 [0] : vector<64x256xf32> to vector<256xf32>
    %31 = vector.shape_cast %30 : vector<256xf32> to vector<1x256xf32>
    %c0_18 = arith.constant 0 : index
    %c0_19 = arith.constant 0 : index
    %c0_20 = arith.constant 0 : index
    %32 = vector.load %arg8[%c0_18, %c0_19, %c0_20] : memref<1x1x256xf32, #tpu.memory_space<vmem>>, vector<1x1x256xf32>
    %33 = vector.shape_cast %32 : vector<1x1x256xf32> to vector<1x256xf32>
    %34 = vector.shape_cast %31 : vector<1x256xf32> to vector<1x1x256xf32>
    tpu.vector_store %arg8[%c0_18, %c0_19, %c0_20], %34 {strides = array<i32>} : memref<1x1x256xf32, #tpu.memory_space<vmem>>, vector<1x1x256xf32>,
    return
  }
  func.func @transform_0(%arg0: i32, %arg1: i32) -> (i32, i32, i32) {
    %c0_i32 = arith.constant 0 : i32
    %c0_i32_0 = arith.constant 0 : i32
    return %arg0, %c0_i32, %arg1 : i32, i32, i32
  }
  func.func @transform_1(%arg0: i32, %arg1: i32) -> (i32, i32) {
    %c0_i32 = arith.constant 0 : i32
    %c0_i32_0 = arith.constant 0 : i32
    %c0_i32_1 = arith.constant 0 : i32
    return %c0_i32, %c0_i32_0 : i32, i32
  }
  func.func @transform_2(%arg0: i32, %arg1: i32) -> (i32, i32) {
    %c0_i32 = arith.constant 0 : i32
    %c0_i32_0 = arith.constant 0 : i32
    %c0_i32_1 = arith.constant 0 : i32
    return %c0_i32, %c0_i32_0 : i32, i32
  }
  func.func @transform_3(%arg0: i32, %arg1: i32) -> (i32, i32) {
    %c0_i32 = arith.constant 0 : i32
    %c0_i32_0 = arith.constant 0 : i32
    %c0_i32_1 = arith.constant 0 : i32
    return %c0_i32, %c0_i32_0 : i32, i32
  }
  func.func @transform_4(%arg0: i32, %arg1: i32) -> (i32, i32, i32) {
    %c0_i32 = arith.constant 0 : i32
    %c0_i32_0 = arith.constant 0 : i32
    return %arg0, %c0_i32, %arg1 : i32, i32, i32
  }
  func.func @transform_5(%arg0: i32, %arg1: i32) -> (i32, i32, i32) {
    %c0_i32 = arith.constant 0 : i32
    %c0_i32_0 = arith.constant 0 : i32
    return %arg0, %c0_i32, %arg1 : i32, i32, i32
  }
  func.func @transform_6(%arg0: i32, %arg1: i32) -> (i32, i32, i32) {
    %c0_i32 = arith.constant 0 : i32
    %c0_i32_0 = arith.constant 0 : i32
    return %arg0, %c0_i32, %arg1 : i32, i32, i32
  }
}

</mosaic_0001>

<llo_original>
// kernel: eq.1
$region0: #{eq.1}
  %s0 = inlined_call_operand.vmem [shape: s32[2,143], index: 0, kind: input, shape index: {}]
  %s1 = inlined_call_operand.vmem [shape: s32[286], index: 1, kind: output, shape index: {}]
  $region1: #{eq.1} parent=0
    #allocation0 [shape = 'u8[4096]{0}', space=vmem, size = 0x1000, scoped, tag = 'scoped mem for output reshape']
    #allocation1 [shape = 'u8[8192]{0}', space=vmem, size = 0x2000, scoped, tag = 'scoped mem for input reshape']
    %s3 = sshllo.u32 0, 2
    %s4 = scalar_lea.vmem %s0, 2
    %v5 = vld [vmem:[%s4] sm:%s3]
    %s6 = scalar_lea.vmem [#allocation1], 8
    %7 = vst [vmem:[%s6] sm:%s3] %v5
    %v8 = vld [vmem:[%s0] sm:%s3]
    %9 = vst [vmem:[#allocation1] sm:%s3] %v8
    %s10 = scalar_lea.vmem [#allocation1], 8
    %v11 = vld [vmem:[%s10] sm:$0x1]
    %vm12 = vcmask 121856
    %s13 = scalar_lea.vmem [#allocation0], 1
    %14 = vst.msk [vmem:[%s13] sm:$0x1] %vm12, %v11
    %v15 = vld [vmem:[#allocation1] sm:$0x1]
    %16 = vst [vmem:[#allocation0] sm:$0x1] %v15
    %s17 = scalar_lea.vmem [#allocation1], 1
    %v18 = vld [vmem:[%s17] sm:$0x1]
    %s19 = scalar_lea.vmem [#allocation1], 9
    %v20 = vld [vmem:[%s19] sm:$0x1]
    %vm21 = vcmask 924672
    %v22 = vsel %vm21, %v20, %v18
    %23 = vrot.lane.b32.xlu0 %v22, 15
    %v24 = vpop.permute.xlu0 %23
    %vm25 = vcmask 121856
    %s26 = scalar_lea.vmem [#allocation0], 2
    %27 = vst.msk [vmem:[%s26] sm:$0x1] %vm25, %v24
    %vm28 = vcmask 244856
    %s29 = scalar_lea.vmem [#allocation0], 2
    %30 = vst.msk [vmem:[%s29] sm:$0x1] %vm28, %v24
    %s31 = scalar_lea.vmem [#allocation1], 1
    %v32 = vld [vmem:[%s31] sm:$0x1]
    %33 = vrot.lane.b32.xlu0 %v32, 15
    %v34 = vpop.permute.xlu0 %33
    %vm35 = vcmask 1047672
    %s36 = scalar_lea.vmem [#allocation0], 1
    %37 = vst.msk [vmem:[%s36] sm:$0x1] %vm35, %v34
    %s39 = sshllo.u32 0, 4
    %v41 = vld [vmem:[#allocation0] sm:%s39]
    %s42 = sshllo.u32 0, 4
    %43 = vst [vmem:[%s1] sm:%s42] %v41

// kernel: vector_quantizer_ema_forward.1
$region0: #{vector_quantizer_ema_forward.1}
  #allocation0 [shape = 'u32[]', space=smem, size = 0x4, offset = 0x4, fixed_abs, tag = 'smem constant byte address 0x4 - core index']
  #allocation1 [shape = 'u32[144,128]{1,0:T(1,128)}', space=vmem, size = 0x12000, scoped, tag = 'internal scratch']
  %s0 = inlined_call_operand.vmem [shape: f32[2,64,256], index: 0, kind: input, shape index: {}]
  %s1 = inlined_call_operand.vmem [shape: f32[256,64], index: 1, kind: input, shape index: {}]
  %s2 = inlined_call_operand.vmem [shape: f32[64,256], index: 2, kind: input, shape index: {}]
  %s3 = inlined_call_operand.vmem [shape: f32[256,1], index: 3, kind: input, shape index: {}]
  %s4 = inlined_call_operand.vmem [shape: s32[2,1,256], index: 4, kind: output, shape index: {0}]
  %s5 = inlined_call_operand.vmem [shape: f32[2,64,256], index: 5, kind: output, shape index: {1}]
  %s6 = inlined_call_operand.vmem [shape: f32[2,1,256], index: 6, kind: output, shape index: {2}]
  %7 = xla_tuple %s4, %s5, %s6
  %s8 = sld [smem:[#allocation0]]
  $region65: #{vector_quantizer_ema_forward.1} parent=0
    _
  %s10 = ssub.s32 1, %s8
  %s11 = scalar_select 0, %s10, %s8
  loop: start=0, step=1, limit=4
  $region2: #{vector_quantizer_ema_forward.1} parent=0 // loop_pre_header
    _
  $region3: #{vector_quantizer_ema_forward.1} parent=0 // loop_header
    %s13 = sphi 0, %s17
    %p14 = scmp.ge.s32.totalorder %s13, 4
    %s20 = sphi 0, %s32
    %s21 = sphi 0, %s28
    %s22 = sphi 0, %s20
    %s23 = sphi 0, %s21
    %s24 = sphi 0, %s22
    %s25 = sphi 0, %s23
    %s37 = sphi 0, %s39
    %s40 = sphi 0, %s37
    %s41 = sphi 0, %s40
    %s57 = sphi 0, %s41
    %s61 = sphi 0, %s61
    %s63 = sphi 0, %s61
    %s64 = sphi 0, %s63
    %s78 = sphi 0, %s64
    %s82 = sphi 0, %s82
    %s84 = sphi 0, %s82
    %s85 = sphi 0, %s84
    %s99 = sphi 0, %s85
    %s103 = sphi 0, %s103
    %s105 = sphi 0, %s103
    %s106 = sphi 0, %s105
    %s120 = sphi 0, %s106
    %s128 = sphi 0, %s130
    %s131 = sphi 0, %s128
    %s132 = sphi 0, %s131
    %s148 = sphi 0, %s132
    %s156 = sphi 0, %s158
    %s159 = sphi 0, %s156
    %s160 = sphi 0, %s159
    %s176 = sphi 0, %s160
    %s184 = sphi 0, %s186
    %s187 = sphi 0, %s184
    %s188 = sphi 0, %s187
    %s204 = sphi 0, %s188
  $region4: #{vector_quantizer_ema_forward.1} parent=0 // loop_header_branch
    %16 = sbr.rel (%p14) target = $region8
  $region5: #{vector_quantizer_ema_forward.1} parent=0 // loop_body
    %s18 = ssub.s32 %s13, 1
    %s19 = ssub.s32 %s13, 2
    %s26 = sadd.s32 1, %s21
    %p27 = scmp.ge.s32.totalorder %s26, 1
    %s28 = scalar_select %p27, 0, %s26
    %s29 = sadd.s32 1, %s20
    %s30 = scalar_select %p27, %s29, %s20
    %p31 = scmp.ge.s32.totalorder %s30, 2
    %s32 = scalar_select %p31, 0, %s30
    %s33 = ssub.s32 %s20, %s32
    %s34 = ssub.s32 %s21, %s28
    %s35 = sor.u32 %s33, %s34
    %p36 = scmp.eq.s32.totalorder %s35, 0
    %s38 = sadd.s32 %s37, 1
    %s39 = scalar_select %p36, %s37, %s38
    %p42 = pneg %p36
    %p43 = scmp.eq.s32.totalorder %s13, 1
    %p44 = por %p42, %p43
    %p45 = scmp.ne.s32.totalorder %s37, %s40
    %p46 = scmp.eq.s32.totalorder %s13, 0
    %p47 = por %p45, %p46
    %p48 = scmp.ne.s32.totalorder %s37, %s40
    %p49 = scmp.eq.s32.totalorder %s18, 1
    %p50 = por %p48, %p49
    %p51 = scmp.ne.s32.totalorder %s40, %s41
    %p52 = scmp.eq.s32.totalorder %s18, 0
    %p53 = por %p51, %p52
    %p54 = scmp.ne.s32.totalorder %s40, %s41
    %p55 = scmp.eq.s32.totalorder %s19, 1
    %p56 = por %p54, %p55
    %p58 = scmp.ne.s32.totalorder %s41, %s57
    %p59 = scmp.eq.s32.totalorder %s19, 0
    %p60 = por %p58, %p59
    %s62 = sadd.s32 %s61, 1
    %p65 = scmp.eq.s32.totalorder %s13, 1
    %p66 = scmp.ne.s32.totalorder %s61, %s63
    %p67 = scmp.eq.s32.totalorder %s13, 0
    %p68 = por %p66, %p67
    %p69 = scmp.ne.s32.totalorder %s61, %s63
    %p70 = scmp.eq.s32.totalorder %s18, 1
    %p71 = por %p69, %p70
    %p72 = scmp.ne.s32.totalorder %s63, %s64
    %p73 = scmp.eq.s32.totalorder %s18, 0
    %p74 = por %p72, %p73
    %p75 = scmp.ne.s32.totalorder %s63, %s64
    %p76 = scmp.eq.s32.totalorder %s19, 1
    %p77 = por %p75, %p76
    %p79 = scmp.ne.s32.totalorder %s64, %s78
    %p80 = scmp.eq.s32.totalorder %s19, 0
    %p81 = por %p79, %p80
    %s83 = sadd.s32 %s82, 1
    %p86 = scmp.eq.s32.totalorder %s13, 1
    %p87 = scmp.ne.s32.totalorder %s82, %s84
    %p88 = scmp.eq.s32.totalorder %s13, 0
    %p89 = por %p87, %p88
    %p90 = scmp.ne.s32.totalorder %s82, %s84
    %p91 = scmp.eq.s32.totalorder %s18, 1
    %p92 = por %p90, %p91
    %p93 = scmp.ne.s32.totalorder %s84, %s85
    %p94 = scmp.eq.s32.totalorder %s18, 0
    %p95 = por %p93, %p94
    %p96 = scmp.ne.s32.totalorder %s84, %s85
    %p97 = scmp.eq.s32.totalorder %s19, 1
    %p98 = por %p96, %p97
    %p100 = scmp.ne.s32.totalorder %s85, %s99
    %p101 = scmp.eq.s32.totalorder %s19, 0
    %p102 = por %p100, %p101
    %s104 = sadd.s32 %s103, 1
    %p107 = scmp.eq.s32.totalorder %s13, 1
    %p108 = scmp.ne.s32.totalorder %s103, %s105
    %p109 = scmp.eq.s32.totalorder %s13, 0
    %p110 = por %p108, %p109
    %p111 = scmp.ne.s32.totalorder %s103, %s105
    %p112 = scmp.eq.s32.totalorder %s18, 1
    %p113 = por %p111, %p112
    %p114 = scmp.ne.s32.totalorder %s105, %s106
    %p115 = scmp.eq.s32.totalorder %s18, 0
    %p116 = por %p114, %p115
    %p117 = scmp.ne.s32.totalorder %s105, %s106
    %p118 = scmp.eq.s32.totalorder %s19, 1
    %p119 = por %p117, %p118
    %p121 = scmp.ne.s32.totalorder %s106, %s120
    %p122 = scmp.eq.s32.totalorder %s19, 0
    %p123 = por %p121, %p122
    %s124 = ssub.s32 %s20, %s32
    %s125 = ssub.s32 %s21, %s28
    %s126 = sor.u32 %s124, %s125
    %p127 = scmp.eq.s32.totalorder %s126, 0
    %s129 = sadd.s32 %s128, 1
    %s130 = scalar_select %p127, %s128, %s129
    %p133 = pneg %p127
    %p134 = scmp.eq.s32.totalorder %s13, 1
    %p135 = por %p133, %p134
    %p136 = scmp.ne.s32.totalorder %s128, %s131
    %p137 = scmp.eq.s32.totalorder %s13, 0
    %p138 = por %p136, %p137
    %p139 = scmp.ne.s32.totalorder %s128, %s131
    %p140 = scmp.eq.s32.totalorder %s18, 1
    %p141 = por %p139, %p140
    %p142 = scmp.ne.s32.totalorder %s131, %s132
    %p143 = scmp.eq.s32.totalorder %s18, 0
    %p144 = por %p142, %p143
    %p145 = scmp.ne.s32.totalorder %s131, %s132
    %p146 = scmp.eq.s32.totalorder %s19, 1
    %p147 = por %p145, %p146
    %p149 = scmp.ne.s32.totalorder %s132, %s148
    %p150 = scmp.eq.s32.totalorder %s19, 0
    %p151 = por %p149, %p150
    %s152 = ssub.s32 %s20, %s32
    %s153 = ssub.s32 %s21, %s28
    %s154 = sor.u32 %s152, %s153
    %p155 = scmp.eq.s32.totalorder %s154, 0
    %s157 = sadd.s32 %s156, 1
    %s158 = scalar_select %p155, %s156, %s157
    %p161 = pneg %p155
    %p162 = scmp.eq.s32.totalorder %s13, 1
    %p163 = por %p161, %p162
    %p164 = scmp.ne.s32.totalorder %s156, %s159
    %p165 = scmp.eq.s32.totalorder %s13, 0
    %p166 = por %p164, %p165
    %p167 = scmp.ne.s32.totalorder %s156, %s159
    %p168 = scmp.eq.s32.totalorder %s18, 1
    %p169 = por %p167, %p168
    %p170 = scmp.ne.s32.totalorder %s159, %s160
    %p171 = scmp.eq.s32.totalorder %s18, 0
    %p172 = por %p170, %p171
    %p173 = scmp.ne.s32.totalorder %s159, %s160
    %p174 = scmp.eq.s32.totalorder %s19, 1
    %p175 = por %p173, %p174
    %p177 = scmp.ne.s32.totalorder %s160, %s176
    %p178 = scmp.eq.s32.totalorder %s19, 0
    %p179 = por %p177, %p178
    %s180 = ssub.s32 %s20, %s32
    %s181 = ssub.s32 %s21, %s28
    %s182 = sor.u32 %s180, %s181
    %p183 = scmp.eq.s32.totalorder %s182, 0
    %s185 = sadd.s32 %s184, 1
    %s186 = scalar_select %p183, %s184, %s185
    %p189 = pneg %p183
    %p190 = scmp.eq.s32.totalorder %s13, 1
    %p191 = por %p189, %p190
    %p192 = scmp.ne.s32.totalorder %s184, %s187
    %p193 = scmp.eq.s32.totalorder %s13, 0
    %p194 = por %p192, %p193
    %p195 = scmp.ne.s32.totalorder %s184, %s187
    %p196 = scmp.eq.s32.totalorder %s18, 1
    %p197 = por %p195, %p196
    %p198 = scmp.ne.s32.totalorder %s187, %s188
    %p199 = scmp.eq.s32.totalorder %s18, 0
    %p200 = por %p198, %p199
    %p201 = scmp.ne.s32.totalorder %s187, %s188
    %p202 = scmp.eq.s32.totalorder %s19, 1
    %p203 = por %p201, %p202
    %p205 = scmp.ne.s32.totalorder %s188, %s204
    %p206 = scmp.eq.s32.totalorder %s19, 0
    %p207 = por %p205, %p206
    %p208 = scmp.le.s32.totalorder 1, %s13
    %p209 = scmp.lt.s32.totalorder %s13, 3
    %p210 = pnand %p208, %p209
    %p211 = pneg %p210
    // Predicated region
    $region9: #{vector_quantizer_ema_forward.1} parent=5 // pred_check
      _
    $region10: #{vector_quantizer_ema_forward.1} parent=5 // pred_check_branch
      %213 = sbr.rel (%p210) target = $region12
    $region11: #{vector_quantizer_ema_forward.1} parent=5 // pred_region
      %s214 = ssub.s32 %s13, 1
      // Predicated region
      $region13: #{vector_quantizer_ema_forward.1} parent=11 // pred_check
        %p215 = pneg %p74
      $region14: #{vector_quantizer_ema_forward.1} parent=11 // pred_check_branch
        %217 = sbr.rel (%p215) target = $region16
      $region15: #{vector_quantizer_ema_forward.1} parent=11 // pred_region
        _
      $region16: #{vector_quantizer_ema_forward.1} parent=11 // pred_fallthru
        _
      // Predicated region
      $region17: #{vector_quantizer_ema_forward.1} parent=11 // pred_check
        %p218 = pneg %p95
      $region18: #{vector_quantizer_ema_forward.1} parent=11 // pred_check_branch
        %220 = sbr.rel (%p218) target = $region20
      $region19: #{vector_quantizer_ema_forward.1} parent=11 // pred_region
        _
      $region20: #{vector_quantizer_ema_forward.1} parent=11 // pred_fallthru
        _
      // Predicated region
      $region21: #{vector_quantizer_ema_forward.1} parent=11 // pred_check
        %p221 = pneg %p116
      $region22: #{vector_quantizer_ema_forward.1} parent=11 // pred_check_branch
        %223 = sbr.rel (%p221) target = $region24
      $region23: #{vector_quantizer_ema_forward.1} parent=11 // pred_region
        _
      $region24: #{vector_quantizer_ema_forward.1} parent=11 // pred_fallthru
        _
    $region12: #{vector_quantizer_ema_forward.1} parent=5 // pred_fallthru
      _
    %p224 = scmp.lt.s32.totalorder %s13, 2
    // Predicated region
    $region25: #{vector_quantizer_ema_forward.1} parent=5 // pred_check
      %p225 = pneg %p224
    $region26: #{vector_quantizer_ema_forward.1} parent=5 // pred_check_branch
      %227 = sbr.rel (%p225) target = $region28
    $region27: #{vector_quantizer_ema_forward.1} parent=5 // pred_region
      // Predicated region
      $region29: #{vector_quantizer_ema_forward.1} parent=27 // pred_check
        %p228 = pneg %p47
      $region30: #{vector_quantizer_ema_forward.1} parent=27 // pred_check_branch
        %230 = sbr.rel (%p228) target = $region32
      $region31: #{vector_quantizer_ema_forward.1} parent=27 // pred_region
        %s231 = smul.u32 2, %s21
        %p232 = scmp.lt.s32.totalorder %s20, 1
        %s233 = scalar_select %p232, %s20, 1
        %p234 = scmp.lt.s32.totalorder %s231, 1
        %s235 = scalar_select %p234, %s231, 1
        %s236 = smul.addr %s233, 16
        %s237 = sadd.s32 %s235, %s236
        %s238 = smul.addr %s237, 8
        %s239 = scalar_lea.vmem %s0, %s238
        %s240 = smul.u32 2, %s21
      $region32: #{vector_quantizer_ema_forward.1} parent=27 // pred_fallthru
        _
    $region28: #{vector_quantizer_ema_forward.1} parent=5 // pred_fallthru
      _
    %p241 = scmp.le.s32.totalorder 1, %s13
    %p242 = scmp.lt.s32.totalorder %s13, 3
    %p243 = pnand %p241, %p242
    %p244 = pneg %p243
    // Predicated region
    $region33: #{vector_quantizer_ema_forward.1} parent=5 // pred_check
      _
    $region34: #{vector_quantizer_ema_forward.1} parent=5 // pred_check_branch
      %246 = sbr.rel (%p243) target = $region36
    $region35: #{vector_quantizer_ema_forward.1} parent=5 // pred_region
      %s247 = ssub.s32 %s13, 1
      %s248 = smul.u32 2, %s23
      %p249 = scmp.lt.s32.totalorder %s22, 1
      %s250 = scalar_select %p249, %s22, 1
      %p251 = scmp.lt.s32.totalorder %s248, 1
      %s252 = scalar_select %p251, %s248, 1
      %s253 = smul.addr %s250, 16
      %s254 = sadd.s32 %s252, %s253
      %s255 = smul.addr %s254, 8
      %s256 = scalar_lea.vmem %s0, %s255
      %p257 = pneg %p53
      %p258 = pneg %p50
      %p259 = pneg %p74
      %p260 = pneg %p71
      %p261 = pneg %p95
      %p262 = pneg %p92
      %p263 = pneg %p116
      %p264 = pneg %p113
      %p265 = pneg %p144
      %p266 = pneg %p141
      %s267 = smul.u32 2, %s23
      %p268 = scmp.lt.s32.totalorder %s22, 1
      %s269 = scalar_select %p268, %s22, 1
      %p270 = scmp.lt.s32.totalorder %s267, 1
      %s271 = scalar_select %p270, %s267, 1
      %s272 = smul.addr %s269, 2
      %s273 = sadd.s32 %s271, %s272
      %s274 = scalar_lea.vmem %s4, %s273
      %p275 = pneg %p172
      %p276 = pneg %p169
      %s277 = smul.u32 2, %s23
      %p278 = scmp.lt.s32.totalorder %s22, 1
      %s279 = scalar_select %p278, %s22, 1
      %p280 = scmp.lt.s32.totalorder %s277, 1
      %s281 = scalar_select %p280, %s277, 1
      %s282 = smul.addr %s279, 16
      %s283 = sadd.s32 %s281, %s282
      %s284 = smul.addr %s283, 8
      %s285 = scalar_lea.vmem %s5, %s284
      %p286 = pneg %p200
      %p287 = pneg %p197
      %s288 = smul.u32 2, %s23
      %p289 = scmp.lt.s32.totalorder %s22, 1
      %s290 = scalar_select %p289, %s22, 1
      %p291 = scmp.lt.s32.totalorder %s288, 1
      %s292 = scalar_select %p291, %s288, 1
      %s293 = smul.addr %s290, 2
      %s294 = sadd.s32 %s292, %s293
      %s295 = scalar_lea.vmem %s6, %s294
      %s296 = smul.u32 2, %s23
      %p297 = scmp.lt.s32.totalorder %s22, 1
      %s298 = scalar_select %p297, %s22, 1
      %p299 = scmp.lt.s32.totalorder %s296, 1
      %s300 = scalar_select %p299, %s296, 1
      %s301 = smul.addr %s298, 16
      %s302 = sadd.s32 %s300, %s301
      %s303 = smul.addr %s302, 8
      %s304 = scalar_lea.vmem %s0, %s303
      %s305 = smul.u32 2, %s23
      %s306 = smul.u32 2, %s23
      %p307 = scmp.lt.s32.totalorder %s22, 1
      %s308 = scalar_select %p307, %s22, 1
      %p309 = scmp.lt.s32.totalorder %s306, 1
      %s310 = scalar_select %p309, %s306, 1
      %s311 = smul.addr %s308, 2
      %s312 = sadd.s32 %s310, %s311
      %s313 = scalar_lea.vmem %s4, %s312
      %s314 = smul.u32 2, %s23
      %s315 = smul.u32 2, %s23
      %p316 = scmp.lt.s32.totalorder %s22, 1
      %s317 = scalar_select %p316, %s22, 1
      %p318 = scmp.lt.s32.totalorder %s315, 1
      %s319 = scalar_select %p318, %s315, 1
      %s320 = smul.addr %s317, 16
      %s321 = sadd.s32 %s319, %s320
      %s322 = smul.addr %s321, 8
      %s323 = scalar_lea.vmem %s5, %s322
      %s324 = smul.u32 2, %s23
      %s325 = smul.u32 2, %s23
      %p326 = scmp.lt.s32.totalorder %s22, 1
      %s327 = scalar_select %p326, %s22, 1
      %p328 = scmp.lt.s32.totalorder %s325, 1
      %s329 = scalar_select %p328, %s325, 1
      %s330 = smul.addr %s327, 2
      %s331 = sadd.s32 %s329, %s330
      %s332 = scalar_lea.vmem %s6, %s331
      %s333 = smul.u32 2, %s23
      %v334 = vld [vmem:[%s304] sm:$0xff]
      %v335 = vld [vmem:[%s304 + $0x8] sm:$0xff]
      %v336 = vld [vmem:[%s304 + $0x10] sm:$0xff]
      %v337 = vld [vmem:[%s304 + $0x18] sm:$0xff]
      %v338 = vld [vmem:[%s304 + $0x20] sm:$0xff]
      %v339 = vld [vmem:[%s304 + $0x28] sm:$0xff]
      %v340 = vld [vmem:[%s304 + $0x30] sm:$0xff]
      %v341 = vld [vmem:[%s304 + $0x38] sm:$0xff]
      %v342 = vld [vmem:[%s304 + $0x40] sm:$0xff]
      %v343 = vld [vmem:[%s304 + $0x48] sm:$0xff]
      %v344 = vld [vmem:[%s304 + $0x50] sm:$0xff]
      %v345 = vld [vmem:[%s304 + $0x58] sm:$0xff]
      %v346 = vld [vmem:[%s304 + $0x60] sm:$0xff]
      %v347 = vld [vmem:[%s304 + $0x68] sm:$0xff]
      %v348 = vld [vmem:[%s304 + $0x70] sm:$0xff]
      %v349 = vld [vmem:[%s304 + $0x78] sm:$0xff]
      %v350 = vld [vmem:[%s1] sm:$0xff]
      %v351 = vld [vmem:[%s1 + $0x8] sm:$0xff]
      %v352 = vld [vmem:[%s1 + $0x10] sm:$0xff]
      %v353 = vld [vmem:[%s1 + $0x18] sm:$0xff]
      %v354 = vld [vmem:[%s1 + $0x20] sm:$0xff]
      %v355 = vld [vmem:[%s1 + $0x28] sm:$0xff]
      %v356 = vld [vmem:[%s1 + $0x30] sm:$0xff]
      %v357 = vld [vmem:[%s1 + $0x38] sm:$0xff]
      %v358 = vld [vmem:[%s1 + $0x40] sm:$0xff]
      %v359 = vld [vmem:[%s1 + $0x48] sm:$0xff]
      %v360 = vld [vmem:[%s1 + $0x50] sm:$0xff]
      %v361 = vld [vmem:[%s1 + $0x58] sm:$0xff]
      %v362 = vld [vmem:[%s1 + $0x60] sm:$0xff]
      %v363 = vld [vmem:[%s1 + $0x68] sm:$0xff]
      %v364 = vld [vmem:[%s1 + $0x70] sm:$0xff]
      %v365 = vld [vmem:[%s1 + $0x78] sm:$0xff]
      %v366 = vld [vmem:[%s1 + $0x80] sm:$0xff]
      %v367 = vld [vmem:[%s1 + $0x88] sm:$0xff]
      %v368 = vld [vmem:[%s1 + $0x90] sm:$0xff]
      %v369 = vld [vmem:[%s1 + $0x98] sm:$0xff]
      %v370 = vld [vmem:[%s1 + $0xa0] sm:$0xff]
      %v371 = vld [vmem:[%s1 + $0xa8] sm:$0xff]
      %v372 = vld [vmem:[%s1 + $0xb0] sm:$0xff]
      %v373 = vld [vmem:[%s1 + $0xb8] sm:$0xff]
      %v374 = vld [vmem:[%s1 + $0xc0] sm:$0xff]
      %v375 = vld [vmem:[%s1 + $0xc8] sm:$0xff]
      %v376 = vld [vmem:[%s1 + $0xd0] sm:$0xff]
      %v377 = vld [vmem:[%s1 + $0xd8] sm:$0xff]
      %v378 = vld [vmem:[%s1 + $0xe0] sm:$0xff]
      %v379 = vld [vmem:[%s1 + $0xe8] sm:$0xff]
      %v380 = vld [vmem:[%s1 + $0xf0] sm:$0xff]
      %v381 = vld [vmem:[%s1 + $0xf8] sm:$0xff]
      %vm382 = vcmask 523264
      %v384 = vsel %vm382, %v350, 0
      %v387 = vsel %vm382, %v351, 0
      %v390 = vsel %vm382, %v352, 0
      %v393 = vsel %vm382, %v353, 0
      %v396 = vsel %vm382, %v354, 0
      %v399 = vsel %vm382, %v355, 0
      %v402 = vsel %vm382, %v356, 0
      %v405 = vsel %vm382, %v357, 0
      %v408 = vsel %vm382, %v358, 0
      %v411 = vsel %vm382, %v359, 0
      %v414 = vsel %vm382, %v360, 0
      %v417 = vsel %vm382, %v361, 0
      %v420 = vsel %vm382, %v362, 0
      %v423 = vsel %vm382, %v363, 0
      %v426 = vsel %vm382, %v364, 0
      %v429 = vsel %vm382, %v365, 0
      %v432 = vsel %vm382, %v366, 0
      %v435 = vsel %vm382, %v367, 0
      %v438 = vsel %vm382, %v368, 0
      %v441 = vsel %vm382, %v369, 0
      %v444 = vsel %vm382, %v370, 0
      %v447 = vsel %vm382, %v371, 0
      %v450 = vsel %vm382, %v372, 0
      %v453 = vsel %vm382, %v373, 0
      %v456 = vsel %vm382, %v374, 0
      %v459 = vsel %vm382, %v375, 0
      %v462 = vsel %vm382, %v376, 0
      %v465 = vsel %vm382, %v377, 0
      %v468 = vsel %vm382, %v378, 0
      %v471 = vsel %vm382, %v379, 0
      %v474 = vsel %vm382, %v380, 0
      %v477 = vsel %vm382, %v381, 0
      %479 = vmatprep.subr.mxu0 %v335
      %480 = vmatpush1.msra.mxu0 %v334
      %481 = vmatprep.subr.mxu0 %v337
      %482 = vmatpush1.msra.mxu0 %v336
      %483 = vmatprep.subr.mxu0 %v339
      %484 = vmatpush1.msra.mxu0 %v338
      %485 = vmatprep.subr.mxu0 %v341
      %486 = vmatpush1.msra.mxu0 %v340
      %487 = vmatprep.subr.mxu0 %v343
      %488 = vmatpush1.msra.mxu0 %v342
      %489 = vmatprep.subr.mxu0 %v345
      %490 = vmatpush1.msra.mxu0 %v344
      %491 = vmatprep.subr.mxu0 %v347
      %492 = vmatpush1.msra.mxu0 %v346
      %493 = vmatprep.subr.mxu0 %v349
      %494 = vmatpush1.msra.mxu0 %v348
      %495 = vmatprep.subr.mxu0 0.0
      %496 = vmatpush1.msra.mxu0 0.0
      %497 = vmatprep.subr.mxu0 0.0
      %498 = vmatpush1.msra.mxu0 0.0
      %499 = vmatprep.subr.mxu0 0.0
      %500 = vmatpush1.msra.mxu0 0.0
      %501 = vmatprep.subr.mxu0 0.0
      %502 = vmatpush1.msra.mxu0 0.0
      %503 = vmatprep.subr.mxu0 0.0
      %504 = vmatpush1.msra.mxu0 0.0
      %505 = vmatprep.subr.mxu0 0.0
      %506 = vmatpush1.msra.mxu0 0.0
      %507 = vmatprep.subr.mxu0 0.0
      %508 = vmatpush1.msra.mxu0 0.0
      %509 = vmatprep.subr.mxu0 0.0
      %510 = vmatpush1.msra.mxu0 0.0
      %511 = vmatprep.subr.mxu0 0.0
      %512 = vmatpush1.msra.mxu0 0.0
      %513 = vmatprep.subr.mxu0 0.0
      %514 = vmatpush1.msra.mxu0 0.0
      %515 = vmatprep.subr.mxu0 0.0
      %516 = vmatpush1.msra.mxu0 0.0
      %517 = vmatprep.subr.mxu0 0.0
      %518 = vmatpush1.msra.mxu0 0.0
      %519 = vmatprep.subr.mxu0 0.0
      %520 = vmatpush1.msra.mxu0 0.0
      %521 = vmatprep.subr.mxu0 0.0
      %522 = vmatpush1.msra.mxu0 0.0
      %523 = vmatprep.subr.mxu0 0.0
      %524 = vmatpush1.msra.mxu0 0.0
      %525 = vmatprep.subr.mxu0 0.0
      %526 = vmatpush1.msra.mxu0 0.0
      %527 = vmatprep.subr.mxu0 0.0
      %528 = vmatpush1.msra.mxu0 0.0
      %529 = vmatprep.subr.mxu0 0.0
      %530 = vmatpush1.msra.mxu0 0.0
      %531 = vmatprep.subr.mxu0 0.0
      %532 = vmatpush1.msra.mxu0 0.0
      %533 = vmatprep.subr.mxu0 0.0
      %534 = vmatpush1.msra.mxu0 0.0
      %535 = vmatprep.subr.mxu0 0.0
      %536 = vmatpush1.msra.mxu0 0.0
      %537 = vmatprep.subr.mxu0 0.0
      %538 = vmatpush1.msra.mxu0 0.0
      %539 = vmatprep.subr.mxu0 0.0
      %540 = vmatpush1.msra.mxu0 0.0
      %541 = vmatprep.subr.mxu0 0.0
      %542 = vmatpush1.msra.mxu0 0.0
      %543 = vmatprep.mubr.f32.mxu0 0.0
      %544 = vmatmul.mubr.f32.gmra.mrb[0].mxu0 %v384
      %v545 = vpop.f32.mrb[0].mxu0
      %v546 = vadd.f32 0.0, %v545
      %v547 = vpop.f32.mrb[0].mxu0
      %v548 = vadd.f32 0.0, %v547
      %549 = vmatprep.mubr.f32.mxu0 0.0
      %550 = vmatmul.mubr.f32.gmra.mrb[0].mxu0 %v387
      %v551 = vpop.f32.mrb[0].mxu0
      %v552 = vadd.f32 0.0, %v551
      %v553 = vpop.f32.mrb[0].mxu0
      %v554 = vadd.f32 0.0, %v553
      %555 = vmatprep.mubr.f32.mxu0 0.0
      %556 = vmatmul.mubr.f32.gmra.mrb[0].mxu0 %v390
      %v557 = vpop.f32.mrb[0].mxu0
      %v558 = vadd.f32 0.0, %v557
      %v559 = vpop.f32.mrb[0].mxu0
      %v560 = vadd.f32 0.0, %v559
      %561 = vmatprep.mubr.f32.mxu0 0.0
      %562 = vmatmul.mubr.f32.gmra.mrb[0].mxu0 %v393
      %v563 = vpop.f32.mrb[0].mxu0
      %v564 = vadd.f32 0.0, %v563
      %v565 = vpop.f32.mrb[0].mxu0
      %v566 = vadd.f32 0.0, %v565
      %567 = vmatprep.mubr.f32.mxu0 0.0
      %568 = vmatmul.mubr.f32.gmra.mrb[0].mxu0 %v396
      %v569 = vpop.f32.mrb[0].mxu0
      %v570 = vadd.f32 0.0, %v569
      %v571 = vpop.f32.mrb[0].mxu0
      %v572 = vadd.f32 0.0, %v571
      %573 = vmatprep.mubr.f32.mxu0 0.0
      %574 = vmatmul.mubr.f32.gmra.mrb[0].mxu0 %v399
      %v575 = vpop.f32.mrb[0].mxu0
      %v576 = vadd.f32 0.0, %v575
      %v577 = vpop.f32.mrb[0].mxu0
      %v578 = vadd.f32 0.0, %v577
      %579 = vmatprep.mubr.f32.mxu0 0.0
      %580 = vmatmul.mubr.f32.gmra.mrb[0].mxu0 %v402
      %v581 = vpop.f32.mrb[0].mxu0
      %v582 = vadd.f32 0.0, %v581
      %v583 = vpop.f32.mrb[0].mxu0
      %v584 = vadd.f32 0.0, %v583
      %585 = vmatprep.mubr.f32.mxu0 0.0
      %586 = vmatmul.mubr.f32.gmra.mrb[0].mxu0 %v405
      %v587 = vpop.f32.mrb[0].mxu0
      %v588 = vadd.f32 0.0, %v587
      %v589 = vpop.f32.mrb[0].mxu0
      %v590 = vadd.f32 0.0, %v589
      %591 = vmatprep.mubr.f32.mxu0 0.0
      %592 = vmatmul.mubr.f32.gmra.mrb[0].mxu0 %v408
      %v593 = vpop.f32.mrb[0].mxu0
      %v594 = vadd.f32 0.0, %v593
      %v595 = vpop.f32.mrb[0].mxu0
      %v596 = vadd.f32 0.0, %v595
      %597 = vmatprep.mubr.f32.mxu0 0.0
      %598 = vmatmul.mubr.f32.gmra.mrb[0].mxu0 %v411
      %v599 = vpop.f32.mrb[0].mxu0
      %v600 = vadd.f32 0.0, %v599
      %v601 = vpop.f32.mrb[0].mxu0
      %v602 = vadd.f32 0.0, %v601
      %603 = vmatprep.mubr.f32.mxu0 0.0
      %604 = vmatmul.mubr.f32.gmra.mrb[0].mxu0 %v414
      %v605 = vpop.f32.mrb[0].mxu0
      %v606 = vadd.f32 0.0, %v605
      %v607 = vpop.f32.mrb[0].mxu0
      %v608 = vadd.f32 0.0, %v607
      %609 = vmatprep.mubr.f32.mxu0 0.0
      %610 = vmatmul.mubr.f32.gmra.mrb[0].mxu0 %v417
      %v611 = vpop.f32.mrb[0].mxu0
      %v612 = vadd.f32 0.0, %v611
      %v613 = vpop.f32.mrb[0].mxu0
      %v614 = vadd.f32 0.0, %v613
      %615 = vmatprep.mubr.f32.mxu0 0.0
      %616 = vmatmul.mubr.f32.gmra.mrb[0].mxu0 %v420
      %v617 = vpop.f32.mrb[0].mxu0
      %v618 = vadd.f32 0.0, %v617
      %v619 = vpop.f32.mrb[0].mxu0
      %v620 = vadd.f32 0.0, %v619
      %621 = vmatprep.mubr.f32.mxu0 0.0
      %622 = vmatmul.mubr.f32.gmra.mrb[0].mxu0 %v423
      %v623 = vpop.f32.mrb[0].mxu0
      %v624 = vadd.f32 0.0, %v623
      %v625 = vpop.f32.mrb[0].mxu0
      %v626 = vadd.f32 0.0, %v625
      %627 = vmatprep.mubr.f32.mxu0 0.0
      %628 = vmatmul.mubr.f32.gmra.mrb[0].mxu0 %v426
      %v629 = vpop.f32.mrb[0].mxu0
      %v630 = vadd.f32 0.0, %v629
      %v631 = vpop.f32.mrb[0].mxu0
      %v632 = vadd.f32 0.0, %v631
      %633 = vmatprep.mubr.f32.mxu0 0.0
      %634 = vmatmul.mubr.f32.gmra.mrb[0].mxu0 %v429
      %v635 = vpop.f32.mrb[0].mxu0
      %v636 = vadd.f32 0.0, %v635
      %v637 = vpop.f32.mrb[0].mxu0
      %v638 = vadd.f32 0.0, %v637
      %639 = vmatprep.mubr.f32.mxu0 0.0
      %640 = vmatmul.mubr.f32.gmra.mrb[0].mxu0 %v432
      %v641 = vpop.f32.mrb[0].mxu0
      %v642 = vadd.f32 0.0, %v641
      %v643 = vpop.f32.mrb[0].mxu0
      %v644 = vadd.f32 0.0, %v643
      %645 = vmatprep.mubr.f32.mxu0 0.0
      %646 = vmatmul.mubr.f32.gmra.mrb[0].mxu0 %v435
      %v647 = vpop.f32.mrb[0].mxu0
      %v648 = vadd.f32 0.0, %v647
      %v649 = vpop.f32.mrb[0].mxu0
      %v650 = vadd.f32 0.0, %v649
      %651 = vmatprep.mubr.f32.mxu0 0.0
      %652 = vmatmul.mubr.f32.gmra.mrb[0].mxu0 %v438
      %v653 = vpop.f32.mrb[0].mxu0
      %v654 = vadd.f32 0.0, %v653
      %v655 = vpop.f32.mrb[0].mxu0
      %v656 = vadd.f32 0.0, %v655
      %657 = vmatprep.mubr.f32.mxu0 0.0
      %658 = vmatmul.mubr.f32.gmra.mrb[0].mxu0 %v441
      %v659 = vpop.f32.mrb[0].mxu0
      %v660 = vadd.f32 0.0, %v659
      %v661 = vpop.f32.mrb[0].mxu0
      %v662 = vadd.f32 0.0, %v661
      %663 = vmatprep.mubr.f32.mxu0 0.0
      %664 = vmatmul.mubr.f32.gmra.mrb[0].mxu0 %v444
      %v665 = vpop.f32.mrb[0].mxu0
      %v666 = vadd.f32 0.0, %v665
      %v667 = vpop.f32.mrb[0].mxu0
      %v668 = vadd.f32 0.0, %v667
      %669 = vmatprep.mubr.f32.mxu0 0.0
      %670 = vmatmul.mubr.f32.gmra.mrb[0].mxu0 %v447
      %v671 = vpop.f32.mrb[0].mxu0
      %v672 = vadd.f32 0.0, %v671
      %v673 = vpop.f32.mrb[0].mxu0
      %v674 = vadd.f32 0.0, %v673
      %675 = vmatprep.mubr.f32.mxu0 0.0
      %676 = vmatmul.mubr.f32.gmra.mrb[0].mxu0 %v450
      %v677 = vpop.f32.mrb[0].mxu0
      %v678 = vadd.f32 0.0, %v677
      %v679 = vpop.f32.mrb[0].mxu0
      %v680 = vadd.f32 0.0, %v679
      %681 = vmatprep.mubr.f32.mxu0 0.0
      %682 = vmatmul.mubr.f32.gmra.mrb[0].mxu0 %v453
      %v683 = vpop.f32.mrb[0].mxu0
      %v684 = vadd.f32 0.0, %v683
      %v685 = vpop.f32.mrb[0].mxu0
      %v686 = vadd.f32 0.0, %v685
      %687 = vmatprep.mubr.f32.mxu0 0.0
      %688 = vmatmul.mubr.f32.gmra.mrb[0].mxu0 %v456
      %v689 = vpop.f32.mrb[0].mxu0
      %v690 = vadd.f32 0.0, %v689
      %v691 = vpop.f32.mrb[0].mxu0
      %v692 = vadd.f32 0.0, %v691
      %693 = vmatprep.mubr.f32.mxu0 0.0
      %694 = vmatmul.mubr.f32.gmra.mrb[0].mxu0 %v459
      %v695 = vpop.f32.mrb[0].mxu0
      %v696 = vadd.f32 0.0, %v695
      %v697 = vpop.f32.mrb[0].mxu0
      %v698 = vadd.f32 0.0, %v697
      %699 = vmatprep.mubr.f32.mxu0 0.0
      %700 = vmatmul.mubr.f32.gmra.mrb[0].mxu0 %v462
      %v701 = vpop.f32.mrb[0].mxu0
      %v702 = vadd.f32 0.0, %v701
      %v703 = vpop.f32.mrb[0].mxu0
      %v704 = vadd.f32 0.0, %v703
      %705 = vmatprep.mubr.f32.mxu0 0.0
      %706 = vmatmul.mubr.f32.gmra.mrb[0].mxu0 %v465
      %v707 = vpop.f32.mrb[0].mxu0
      %v708 = vadd.f32 0.0, %v707
      %v709 = vpop.f32.mrb[0].mxu0
      %v710 = vadd.f32 0.0, %v709
      %711 = vmatprep.mubr.f32.mxu0 0.0
      %712 = vmatmul.mubr.f32.gmra.mrb[0].mxu0 %v468
      %v713 = vpop.f32.mrb[0].mxu0
      %v714 = vadd.f32 0.0, %v713
      %v715 = vpop.f32.mrb[0].mxu0
      %v716 = vadd.f32 0.0, %v715
      %717 = vmatprep.mubr.f32.mxu0 0.0
      %718 = vmatmul.mubr.f32.gmra.mrb[0].mxu0 %v471
      %v719 = vpop.f32.mrb[0].mxu0
      %v720 = vadd.f32 0.0, %v719
      %v721 = vpop.f32.mrb[0].mxu0
      %v722 = vadd.f32 0.0, %v721
      %723 = vmatprep.mubr.f32.mxu0 0.0
      %724 = vmatmul.mubr.f32.gmra.mrb[0].mxu0 %v474
      %v725 = vpop.f32.mrb[0].mxu0
      %v726 = vadd.f32 0.0, %v725
      %v727 = vpop.f32.mrb[0].mxu0
      %v728 = vadd.f32 0.0, %v727
      %729 = vmatprep.mubr.f32.mxu0 0.0
      %730 = vmatmul.mubr.f32.gmra.mrb[0].mxu0 %v477
      %v731 = vpop.f32.mrb[0].mxu0
      %v732 = vadd.f32 0.0, %v731
      %v733 = vpop.f32.mrb[0].mxu0
      %v734 = vadd.f32 0.0, %v733
      %735 = vdwg.mxu0
      %v736 = vld [vmem:[%s3] sm:$0xff]
      %v737 = vld [vmem:[%s3 + $0x8] sm:$0xff]
      %v738 = vld [vmem:[%s3 + $0x10] sm:$0xff]
      %v739 = vld [vmem:[%s3 + $0x18] sm:$0xff]
      %v740 = vld [vmem:[%s3 + $0x20] sm:$0xff]
      %v741 = vld [vmem:[%s3 + $0x28] sm:$0xff]
      %v742 = vld [vmem:[%s3 + $0x30] sm:$0xff]
      %v743 = vld [vmem:[%s3 + $0x38] sm:$0xff]
      %v744 = vld [vmem:[%s3 + $0x40] sm:$0xff]
      %v745 = vld [vmem:[%s3 + $0x48] sm:$0xff]
      %v746 = vld [vmem:[%s3 + $0x50] sm:$0xff]
      %v747 = vld [vmem:[%s3 + $0x58] sm:$0xff]
      %v748 = vld [vmem:[%s3 + $0x60] sm:$0xff]
      %v749 = vld [vmem:[%s3 + $0x68] sm:$0xff]
      %v750 = vld [vmem:[%s3 + $0x70] sm:$0xff]
      %v751 = vld [vmem:[%s3 + $0x78] sm:$0xff]
      %v752 = vld [vmem:[%s3 + $0x80] sm:$0xff]
      %v753 = vld [vmem:[%s3 + $0x88] sm:$0xff]
      %v754 = vld [vmem:[%s3 + $0x90] sm:$0xff]
      %v755 = vld [vmem:[%s3 + $0x98] sm:$0xff]
      %v756 = vld [vmem:[%s3 + $0xa0] sm:$0xff]
      %v757 = vld [vmem:[%s3 + $0xa8] sm:$0xff]
      %v758 = vld [vmem:[%s3 + $0xb0] sm:$0xff]
      %v759 = vld [vmem:[%s3 + $0xb8] sm:$0xff]
      %v760 = vld [vmem:[%s3 + $0xc0] sm:$0xff]
      %v761 = vld [vmem:[%s3 + $0xc8] sm:$0xff]
      %v762 = vld [vmem:[%s3 + $0xd0] sm:$0xff]
      %v763 = vld [vmem:[%s3 + $0xd8] sm:$0xff]
      %v764 = vld [vmem:[%s3 + $0xe0] sm:$0xff]
      %v765 = vld [vmem:[%s3 + $0xe8] sm:$0xff]
      %v766 = vld [vmem:[%s3 + $0xf0] sm:$0xff]
      %v767 = vld [vmem:[%s3 + $0xf8] sm:$0xff]
      %769 = vset.pattern.permute.xlu0 0
      %770 = vperm.xlu0 %769, %v736
      %v771 = vpop.permute.xlu0 %770
      %774 = vset.pattern.permute.xlu0 0
      %775 = vperm.xlu0 %774, %v737
      %v776 = vpop.permute.xlu0 %775
      %779 = vset.pattern.permute.xlu0 0
      %780 = vperm.xlu0 %779, %v738
      %v781 = vpop.permute.xlu0 %780
      %784 = vset.pattern.permute.xlu0 0
      %785 = vperm.xlu0 %784, %v739
      %v786 = vpop.permute.xlu0 %785
      %789 = vset.pattern.permute.xlu0 0
      %790 = vperm.xlu0 %789, %v740
      %v791 = vpop.permute.xlu0 %790
      %794 = vset.pattern.permute.xlu0 0
      %795 = vperm.xlu0 %794, %v741
      %v796 = vpop.permute.xlu0 %795
      %799 = vset.pattern.permute.xlu0 0
      %800 = vperm.xlu0 %799, %v742
      %v801 = vpop.permute.xlu0 %800
      %804 = vset.pattern.permute.xlu0 0
      %805 = vperm.xlu0 %804, %v743
      %v806 = vpop.permute.xlu0 %805
      %809 = vset.pattern.permute.xlu0 0
      %810 = vperm.xlu0 %809, %v744
      %v811 = vpop.permute.xlu0 %810
      %814 = vset.pattern.permute.xlu0 0
      %815 = vperm.xlu0 %814, %v745
      %v816 = vpop.permute.xlu0 %815
      %819 = vset.pattern.permute.xlu0 0
      %820 = vperm.xlu0 %819, %v746
      %v821 = vpop.permute.xlu0 %820
      %824 = vset.pattern.permute.xlu0 0
      %825 = vperm.xlu0 %824, %v747
      %v826 = vpop.permute.xlu0 %825
      %829 = vset.pattern.permute.xlu0 0
      %830 = vperm.xlu0 %829, %v748
      %v831 = vpop.permute.xlu0 %830
      %834 = vset.pattern.permute.xlu0 0
      %835 = vperm.xlu0 %834, %v749
      %v836 = vpop.permute.xlu0 %835
      %839 = vset.pattern.permute.xlu0 0
      %840 = vperm.xlu0 %839, %v750
      %v841 = vpop.permute.xlu0 %840
      %844 = vset.pattern.permute.xlu0 0
      %845 = vperm.xlu0 %844, %v751
      %v846 = vpop.permute.xlu0 %845
      %849 = vset.pattern.permute.xlu0 0
      %850 = vperm.xlu0 %849, %v752
      %v851 = vpop.permute.xlu0 %850
      %854 = vset.pattern.permute.xlu0 0
      %855 = vperm.xlu0 %854, %v753
      %v856 = vpop.permute.xlu0 %855
      %859 = vset.pattern.permute.xlu0 0
      %860 = vperm.xlu0 %859, %v754
      %v861 = vpop.permute.xlu0 %860
      %864 = vset.pattern.permute.xlu0 0
      %865 = vperm.xlu0 %864, %v755
      %v866 = vpop.permute.xlu0 %865
      %869 = vset.pattern.permute.xlu0 0
      %870 = vperm.xlu0 %869, %v756
      %v871 = vpop.permute.xlu0 %870
      %874 = vset.pattern.permute.xlu0 0
      %875 = vperm.xlu0 %874, %v757
      %v876 = vpop.permute.xlu0 %875
      %879 = vset.pattern.permute.xlu0 0
      %880 = vperm.xlu0 %879, %v758
      %v881 = vpop.permute.xlu0 %880
      %884 = vset.pattern.permute.xlu0 0
      %885 = vperm.xlu0 %884, %v759
      %v886 = vpop.permute.xlu0 %885
      %889 = vset.pattern.permute.xlu0 0
      %890 = vperm.xlu0 %889, %v760
      %v891 = vpop.permute.xlu0 %890
      %894 = vset.pattern.permute.xlu0 0
      %895 = vperm.xlu0 %894, %v761
      %v896 = vpop.permute.xlu0 %895
      %899 = vset.pattern.permute.xlu0 0
      %900 = vperm.xlu0 %899, %v762
      %v901 = vpop.permute.xlu0 %900
      %904 = vset.pattern.permute.xlu0 0
      %905 = vperm.xlu0 %904, %v763
      %v906 = vpop.permute.xlu0 %905
      %909 = vset.pattern.permute.xlu0 0
      %910 = vperm.xlu0 %909, %v764
      %v911 = vpop.permute.xlu0 %910
      %914 = vset.pattern.permute.xlu0 0
      %915 = vperm.xlu0 %914, %v765
      %v916 = vpop.permute.xlu0 %915
      %919 = vset.pattern.permute.xlu0 0
      %920 = vperm.xlu0 %919, %v766
      %v921 = vpop.permute.xlu0 %920
      %924 = vset.pattern.permute.xlu0 0
      %925 = vperm.xlu0 %924, %v767
      %v926 = vpop.permute.xlu0 %925
      %v928 = vsub.f32 %v771, %v546
      %v929 = vsub.f32 %v771, %v548
      %v930 = vsub.f32 %v776, %v552
      %v931 = vsub.f32 %v776, %v554
      %v932 = vsub.f32 %v781, %v558
      %v933 = vsub.f32 %v781, %v560
      %v934 = vsub.f32 %v786, %v564
      %v935 = vsub.f32 %v786, %v566
      %v936 = vsub.f32 %v791, %v570
      %v937 = vsub.f32 %v791, %v572
      %v938 = vsub.f32 %v796, %v576
      %v939 = vsub.f32 %v796, %v578
      %v940 = vsub.f32 %v801, %v582
      %v941 = vsub.f32 %v801, %v584
      %v942 = vsub.f32 %v806, %v588
      %v943 = vsub.f32 %v806, %v590
      %v944 = vsub.f32 %v811, %v594
      %v945 = vsub.f32 %v811, %v596
      %v946 = vsub.f32 %v816, %v600
      %v947 = vsub.f32 %v816, %v602
      %v948 = vsub.f32 %v821, %v606
      %v949 = vsub.f32 %v821, %v608
      %v950 = vsub.f32 %v826, %v612
      %v951 = vsub.f32 %v826, %v614
      %v952 = vsub.f32 %v831, %v618
      %v953 = vsub.f32 %v831, %v620
      %v954 = vsub.f32 %v836, %v624
      %v955 = vsub.f32 %v836, %v626
      %v956 = vsub.f32 %v841, %v630
      %v957 = vsub.f32 %v841, %v632
      %v958 = vsub.f32 %v846, %v636
      %v959 = vsub.f32 %v846, %v638
      %v960 = vsub.f32 %v851, %v642
      %v961 = vsub.f32 %v851, %v644
      %v962 = vsub.f32 %v856, %v648
      %v963 = vsub.f32 %v856, %v650
      %v964 = vsub.f32 %v861, %v654
      %v965 = vsub.f32 %v861, %v656
      %v966 = vsub.f32 %v866, %v660
      %v967 = vsub.f32 %v866, %v662
      %v968 = vsub.f32 %v871, %v666
      %v969 = vsub.f32 %v871, %v668
      %v970 = vsub.f32 %v876, %v672
      %v971 = vsub.f32 %v876, %v674
      %v972 = vsub.f32 %v881, %v678
      %v973 = vsub.f32 %v881, %v680
      %v974 = vsub.f32 %v886, %v684
      %v975 = vsub.f32 %v886, %v686
      %v976 = vsub.f32 %v891, %v690
      %v977 = vsub.f32 %v891, %v692
      %v978 = vsub.f32 %v896, %v696
      %v979 = vsub.f32 %v896, %v698
      %v980 = vsub.f32 %v901, %v702
      %v981 = vsub.f32 %v901, %v704
      %v982 = vsub.f32 %v906, %v708
      %v983 = vsub.f32 %v906, %v710
      %v984 = vsub.f32 %v911, %v714
      %v985 = vsub.f32 %v911, %v716
      %v986 = vsub.f32 %v916, %v720
      %v987 = vsub.f32 %v916, %v722
      %v988 = vsub.f32 %v921, %v726
      %v989 = vsub.f32 %v921, %v728
      %v990 = vsub.f32 %v926, %v732
      %v991 = vsub.f32 %v926, %v734
      %v992 = vlaneseq
      %v993 = vshrl.u32 %v992, 7
      %v994 = vadd.s32 %v993, 8
      %v995 = vadd.s32 %v993, 16
      %v996 = vadd.s32 %v993, 24
      %v997 = vadd.s32 %v993, 32
      %v998 = vadd.s32 %v993, 40
      %v999 = vadd.s32 %v993, 48
      %v1000 = vadd.s32 %v993, 56
      %v1001 = vadd.s32 %v993, 64
      %v1002 = vadd.s32 %v993, 72
      %v1003 = vadd.s32 %v993, 80
      %v1004 = vadd.s32 %v993, 88
      %v1005 = vadd.s32 %v993, 96
      %v1006 = vadd.s32 %v993, 104
      %v1007 = vadd.s32 %v993, 112
      %v1008 = vadd.s32 %v993, 120
      %v1009 = vadd.s32 %v993, 128
      %v1010 = vadd.s32 %v993, 136
      %v1011 = vadd.s32 %v993, 144
      %v1012 = vadd.s32 %v993, 152
      %v1013 = vadd.s32 %v993, 160
      %v1014 = vadd.s32 %v993, 168
      %v1015 = vadd.s32 %v993, 176
      %v1016 = vadd.s32 %v993, 184
      %v1017 = vadd.s32 %v993, 192
      %v1018 = vadd.s32 %v993, 200
      %v1019 = vadd.s32 %v993, 208
      %v1020 = vadd.s32 %v993, 216
      %v1021 = vadd.s32 %v993, 224
      %v1022 = vadd.s32 %v993, 232
      %v1023 = vadd.s32 %v993, 240
      %v1024 = vadd.s32 %v993, 248
      %v1025 = vmin.f32 %v928, %v932
      %v1026 = vmin.f32 %v930, %v934
      %v1027 = vmin.f32 %v1025, %v936
      %v1028 = vmin.f32 %v1026, %v938
      %v1029 = vmin.f32 %v1027, %v940
      %v1030 = vmin.f32 %v1028, %v942
      %v1031 = vmin.f32 %v1029, %v944
      %v1032 = vmin.f32 %v1030, %v946
      %v1033 = vmin.f32 %v1031, %v948
      %v1034 = vmin.f32 %v1032, %v950
      %v1035 = vmin.f32 %v1033, %v952
      %v1036 = vmin.f32 %v1034, %v954
      %v1037 = vmin.f32 %v1035, %v956
      %v1038 = vmin.f32 %v1036, %v958
      %v1039 = vmin.f32 %v1037, %v960
      %v1040 = vmin.f32 %v1038, %v962
      %v1041 = vmin.f32 %v1039, %v964
      %v1042 = vmin.f32 %v1040, %v966
      %v1043 = vmin.f32 %v1041, %v968
      %v1044 = vmin.f32 %v1042, %v970
      %v1045 = vmin.f32 %v1043, %v972
      %v1046 = vmin.f32 %v1044, %v974
      %v1047 = vmin.f32 %v1045, %v976
      %v1048 = vmin.f32 %v1046, %v978
      %v1049 = vmin.f32 %v1047, %v980
      %v1050 = vmin.f32 %v1048, %v982
      %v1051 = vmin.f32 %v1049, %v984
      %v1052 = vmin.f32 %v1050, %v986
      %v1053 = vmin.f32 %v1051, %v988
      %v1054 = vmin.f32 %v1052, %v990
      %v1055 = vmin.f32 %v1053, %v1054
      %v1056 = vrot.slane %v1055, 4
      %v1057 = vmin.f32 %v1055, %v1056
      %v1058 = vrot.slane %v1057, 2
      %v1059 = vmin.f32 %v1057, %v1058
      %v1060 = vrot.slane %v1059, 1
      %v1061 = vmin.f32 %v1059, %v1060
      %v1062 = vmin.f32 %v929, %v933
      %v1063 = vmin.f32 %v931, %v935
      %v1064 = vmin.f32 %v1062, %v937
      %v1065 = vmin.f32 %v1063, %v939
      %v1066 = vmin.f32 %v1064, %v941
      %v1067 = vmin.f32 %v1065, %v943
      %v1068 = vmin.f32 %v1066, %v945
      %v1069 = vmin.f32 %v1067, %v947
      %v1070 = vmin.f32 %v1068, %v949
      %v1071 = vmin.f32 %v1069, %v951
      %v1072 = vmin.f32 %v1070, %v953
      %v1073 = vmin.f32 %v1071, %v955
      %v1074 = vmin.f32 %v1072, %v957
      %v1075 = vmin.f32 %v1073, %v959
      %v1076 = vmin.f32 %v1074, %v961
      %v1077 = vmin.f32 %v1075, %v963
      %v1078 = vmin.f32 %v1076, %v965
      %v1079 = vmin.f32 %v1077, %v967
      %v1080 = vmin.f32 %v1078, %v969
      %v1081 = vmin.f32 %v1079, %v971
      %v1082 = vmin.f32 %v1080, %v973
      %v1083 = vmin.f32 %v1081, %v975
      %v1084 = vmin.f32 %v1082, %v977
      %v1085 = vmin.f32 %v1083, %v979
      %v1086 = vmin.f32 %v1084, %v981
      %v1087 = vmin.f32 %v1085, %v983
      %v1088 = vmin.f32 %v1086, %v985
      %v1089 = vmin.f32 %v1087, %v987
      %v1090 = vmin.f32 %v1088, %v989
      %v1091 = vmin.f32 %v1089, %v991
      %v1092 = vmin.f32 %v1090, %v1091
      %v1093 = vrot.slane %v1092, 4
      %v1094 = vmin.f32 %v1092, %v1093
      %v1095 = vrot.slane %v1094, 2
      %v1096 = vmin.f32 %v1094, %v1095
      %v1097 = vrot.slane %v1096, 1
      %v1098 = vmin.f32 %v1096, %v1097
      %vm1099 = vcmp.eq.f32.partialorder %v928, %v1061
      %vm1100 = vcmp.eq.f32.partialorder %v929, %v1098
      %vm1101 = vcmp.eq.f32.partialorder %v930, %v1061
      %vm1102 = vcmp.eq.f32.partialorder %v931, %v1098
      %vm1103 = vcmp.eq.f32.partialorder %v932, %v1061
      %vm1104 = vcmp.eq.f32.partialorder %v933, %v1098
      %vm1105 = vcmp.eq.f32.partialorder %v934, %v1061
      %vm1106 = vcmp.eq.f32.partialorder %v935, %v1098
      %vm1107 = vcmp.eq.f32.partialorder %v936, %v1061
      %vm1108 = vcmp.eq.f32.partialorder %v937, %v1098
      %vm1109 = vcmp.eq.f32.partialorder %v938, %v1061
      %vm1110 = vcmp.eq.f32.partialorder %v939, %v1098
      %vm1111 = vcmp.eq.f32.partialorder %v940, %v1061
      %vm1112 = vcmp.eq.f32.partialorder %v941, %v1098
      %vm1113 = vcmp.eq.f32.partialorder %v942, %v1061
      %vm1114 = vcmp.eq.f32.partialorder %v943, %v1098
      %vm1115 = vcmp.eq.f32.partialorder %v944, %v1061
      %vm1116 = vcmp.eq.f32.partialorder %v945, %v1098
      %vm1117 = vcmp.eq.f32.partialorder %v946, %v1061
      %vm1118 = vcmp.eq.f32.partialorder %v947, %v1098
      %vm1119 = vcmp.eq.f32.partialorder %v948, %v1061
      %vm1120 = vcmp.eq.f32.partialorder %v949, %v1098
      %vm1121 = vcmp.eq.f32.partialorder %v950, %v1061
      %vm1122 = vcmp.eq.f32.partialorder %v951, %v1098
      %vm1123 = vcmp.eq.f32.partialorder %v952, %v1061
      %vm1124 = vcmp.eq.f32.partialorder %v953, %v1098
      %vm1125 = vcmp.eq.f32.partialorder %v954, %v1061
      %vm1126 = vcmp.eq.f32.partialorder %v955, %v1098
      %vm1127 = vcmp.eq.f32.partialorder %v956, %v1061
      %vm1128 = vcmp.eq.f32.partialorder %v957, %v1098
      %vm1129 = vcmp.eq.f32.partialorder %v958, %v1061
      %vm1130 = vcmp.eq.f32.partialorder %v959, %v1098
      %vm1131 = vcmp.eq.f32.partialorder %v960, %v1061
      %vm1132 = vcmp.eq.f32.partialorder %v961, %v1098
      %vm1133 = vcmp.eq.f32.partialorder %v962, %v1061
      %vm1134 = vcmp.eq.f32.partialorder %v963, %v1098
      %vm1135 = vcmp.eq.f32.partialorder %v964, %v1061
      %vm1136 = vcmp.eq.f32.partialorder %v965, %v1098
      %vm1137 = vcmp.eq.f32.partialorder %v966, %v1061
      %vm1138 = vcmp.eq.f32.partialorder %v967, %v1098
      %vm1139 = vcmp.eq.f32.partialorder %v968, %v1061
      %vm1140 = vcmp.eq.f32.partialorder %v969, %v1098
      %vm1141 = vcmp.eq.f32.partialorder %v970, %v1061
      %vm1142 = vcmp.eq.f32.partialorder %v971, %v1098
      %vm1143 = vcmp.eq.f32.partialorder %v972, %v1061
      %vm1144 = vcmp.eq.f32.partialorder %v973, %v1098
      %vm1145 = vcmp.eq.f32.partialorder %v974, %v1061
      %vm1146 = vcmp.eq.f32.partialorder %v975, %v1098
      %vm1147 = vcmp.eq.f32.partialorder %v976, %v1061
      %vm1148 = vcmp.eq.f32.partialorder %v977, %v1098
      %vm1149 = vcmp.eq.f32.partialorder %v978, %v1061
      %vm1150 = vcmp.eq.f32.partialorder %v979, %v1098
      %vm1151 = vcmp.eq.f32.partialorder %v980, %v1061
      %vm1152 = vcmp.eq.f32.partialorder %v981, %v1098
      %vm1153 = vcmp.eq.f32.partialorder %v982, %v1061
      %vm1154 = vcmp.eq.f32.partialorder %v983, %v1098
      %vm1155 = vcmp.eq.f32.partialorder %v984, %v1061
      %vm1156 = vcmp.eq.f32.partialorder %v985, %v1098
      %vm1157 = vcmp.eq.f32.partialorder %v986, %v1061
      %vm1158 = vcmp.eq.f32.partialorder %v987, %v1098
      %vm1159 = vcmp.eq.f32.partialorder %v988, %v1061
      %vm1160 = vcmp.eq.f32.partialorder %v989, %v1098
      %vm1161 = vcmp.eq.f32.partialorder %v990, %v1061
      %vm1162 = vcmp.eq.f32.partialorder %v991, %v1098
      %v1163 = vsel %vm1099, %v993, 256
      %v1164 = vsel %vm1100, %v993, 256
      %v1165 = vsel %vm1101, %v994, 256
      %v1166 = vsel %vm1102, %v994, 256
      %v1167 = vsel %vm1103, %v995, 256
      %v1168 = vsel %vm1104, %v995, 256
      %v1169 = vsel %vm1105, %v996, 256
      %v1170 = vsel %vm1106, %v996, 256
      %v1171 = vsel %vm1107, %v997, 256
      %v1172 = vsel %vm1108, %v997, 256
      %v1173 = vsel %vm1109, %v998, 256
      %v1174 = vsel %vm1110, %v998, 256
      %v1175 = vsel %vm1111, %v999, 256
      %v1176 = vsel %vm1112, %v999, 256
      %v1177 = vsel %vm1113, %v1000, 256
      %v1178 = vsel %vm1114, %v1000, 256
      %v1179 = vsel %vm1115, %v1001, 256
      %v1180 = vsel %vm1116, %v1001, 256
      %v1181 = vsel %vm1117, %v1002, 256
      %v1182 = vsel %vm1118, %v1002, 256
      %v1183 = vsel %vm1119, %v1003, 256
      %v1184 = vsel %vm1120, %v1003, 256
      %v1185 = vsel %vm1121, %v1004, 256
      %v1186 = vsel %vm1122, %v1004, 256
      %v1187 = vsel %vm1123, %v1005, 256
      %v1188 = vsel %vm1124, %v1005, 256
      %v1189 = vsel %vm1125, %v1006, 256
      %v1190 = vsel %vm1126, %v1006, 256
      %v1191 = vsel %vm1127, %v1007, 256
      %v1192 = vsel %vm1128, %v1007, 256
      %v1193 = vsel %vm1129, %v1008, 256
      %v1194 = vsel %vm1130, %v1008, 256
      %v1195 = vsel %vm1131, %v1009, 256
      %v1196 = vsel %vm1132, %v1009, 256
      %v1197 = vsel %vm1133, %v1010, 256
      %v1198 = vsel %vm1134, %v1010, 256
      %v1199 = vsel %vm1135, %v1011, 256
      %v1200 = vsel %vm1136, %v1011, 256
      %v1201 = vsel %vm1137, %v1012, 256
      %v1202 = vsel %vm1138, %v1012, 256
      %v1203 = vsel %vm1139, %v1013, 256
      %v1204 = vsel %vm1140, %v1013, 256
      %v1205 = vsel %vm1141, %v1014, 256
      %v1206 = vsel %vm1142, %v1014, 256
      %v1207 = vsel %vm1143, %v1015, 256
      %v1208 = vsel %vm1144, %v1015, 256
      %v1209 = vsel %vm1145, %v1016, 256
      %v1210 = vsel %vm1146, %v1016, 256
      %v1211 = vsel %vm1147, %v1017, 256
      %v1212 = vsel %vm1148, %v1017, 256
      %v1213 = vsel %vm1149, %v1018, 256
      %v1214 = vsel %vm1150, %v1018, 256
      %v1215 = vsel %vm1151, %v1019, 256
      %v1216 = vsel %vm1152, %v1019, 256
      %v1217 = vsel %vm1153, %v1020, 256
      %v1218 = vsel %vm1154, %v1020, 256
      %v1219 = vsel %vm1155, %v1021, 256
      %v1220 = vsel %vm1156, %v1021, 256
      %v1221 = vsel %vm1157, %v1022, 256
      %v1222 = vsel %vm1158, %v1022, 256
      %v1223 = vsel %vm1159, %v1023, 256
      %v1224 = vsel %vm1160, %v1023, 256
      %v1225 = vsel %vm1161, %v1024, 256
      %v1226 = vsel %vm1162, %v1024, 256
      %vm1227 = vcmp.lt.s32.totalorder %v1163, %v1167
      %v1228 = vsel %vm1227, %v1163, %v1167
      %vm1229 = vcmp.lt.s32.totalorder %v1165, %v1169
      %v1230 = vsel %vm1229, %v1165, %v1169
      %vm1231 = vcmp.lt.s32.totalorder %v1228, %v1171
      %v1232 = vsel %vm1231, %v1228, %v1171
      %vm1233 = vcmp.lt.s32.totalorder %v1230, %v1173
      %v1234 = vsel %vm1233, %v1230, %v1173
      %vm1235 = vcmp.lt.s32.totalorder %v1232, %v1175
      %v1236 = vsel %vm1235, %v1232, %v1175
      %vm1237 = vcmp.lt.s32.totalorder %v1234, %v1177
      %v1238 = vsel %vm1237, %v1234, %v1177
      %vm1239 = vcmp.lt.s32.totalorder %v1236, %v1179
      %v1240 = vsel %vm1239, %v1236, %v1179
      %vm1241 = vcmp.lt.s32.totalorder %v1238, %v1181
      %v1242 = vsel %vm1241, %v1238, %v1181
      %vm1243 = vcmp.lt.s32.totalorder %v1240, %v1183
      %v1244 = vsel %vm1243, %v1240, %v1183
      %vm1245 = vcmp.lt.s32.totalorder %v1242, %v1185
      %v1246 = vsel %vm1245, %v1242, %v1185
      %vm1247 = vcmp.lt.s32.totalorder %v1244, %v1187
      %v1248 = vsel %vm1247, %v1244, %v1187
      %vm1249 = vcmp.lt.s32.totalorder %v1246, %v1189
      %v1250 = vsel %vm1249, %v1246, %v1189
      %vm1251 = vcmp.lt.s32.totalorder %v1248, %v1191
      %v1252 = vsel %vm1251, %v1248, %v1191
      %vm1253 = vcmp.lt.s32.totalorder %v1250, %v1193
      %v1254 = vsel %vm1253, %v1250, %v1193
      %vm1255 = vcmp.lt.s32.totalorder %v1252, %v1195
      %v1256 = vsel %vm1255, %v1252, %v1195
      %vm1257 = vcmp.lt.s32.totalorder %v1254, %v1197
      %v1258 = vsel %vm1257, %v1254, %v1197
      %vm1259 = vcmp.lt.s32.totalorder %v1256, %v1199
      %v1260 = vsel %vm1259, %v1256, %v1199
      %vm1261 = vcmp.lt.s32.totalorder %v1258, %v1201
      %v1262 = vsel %vm1261, %v1258, %v1201
      %vm1263 = vcmp.lt.s32.totalorder %v1260, %v1203
      %v1264 = vsel %vm1263, %v1260, %v1203
      %vm1265 = vcmp.lt.s32.totalorder %v1262, %v1205
      %v1266 = vsel %vm1265, %v1262, %v1205
      %vm1267 = vcmp.lt.s32.totalorder %v1264, %v1207
      %v1268 = vsel %vm1267, %v1264, %v1207
      %vm1269 = vcmp.lt.s32.totalorder %v1266, %v1209
      %v1270 = vsel %vm1269, %v1266, %v1209
      %vm1271 = vcmp.lt.s32.totalorder %v1268, %v1211
      %v1272 = vsel %vm1271, %v1268, %v1211
      %vm1273 = vcmp.lt.s32.totalorder %v1270, %v1213
      %v1274 = vsel %vm1273, %v1270, %v1213
      %vm1275 = vcmp.lt.s32.totalorder %v1272, %v1215
      %v1276 = vsel %vm1275, %v1272, %v1215
      %vm1277 = vcmp.lt.s32.totalorder %v1274, %v1217
      %v1278 = vsel %vm1277, %v1274, %v1217
      %vm1279 = vcmp.lt.s32.totalorder %v1276, %v1219
      %v1280 = vsel %vm1279, %v1276, %v1219
      %vm1281 = vcmp.lt.s32.totalorder %v1278, %v1221
      %v1282 = vsel %vm1281, %v1278, %v1221
      %vm1283 = vcmp.lt.s32.totalorder %v1280, %v1223
      %v1284 = vsel %vm1283, %v1280, %v1223
      %vm1285 = vcmp.lt.s32.totalorder %v1282, %v1225
      %v1286 = vsel %vm1285, %v1282, %v1225
      %vm1287 = vcmp.lt.s32.totalorder %v1284, %v1286
      %v1288 = vsel %vm1287, %v1284, %v1286
      %v1289 = vrot.slane %v1288, 4
      %vm1290 = vcmp.lt.s32.totalorder %v1288, %v1289
      %v1291 = vsel %vm1290, %v1288, %v1289
      %v1292 = vrot.slane %v1291, 2
      %vm1293 = vcmp.lt.s32.totalorder %v1291, %v1292
      %v1294 = vsel %vm1293, %v1291, %v1292
      %v1295 = vrot.slane %v1294, 1
      %vm1296 = vcmp.lt.s32.totalorder %v1294, %v1295
      %v1297 = vsel %vm1296, %v1294, %v1295
      %vm1298 = vcmp.lt.s32.totalorder %v1164, %v1168
      %v1299 = vsel %vm1298, %v1164, %v1168
      %vm1300 = vcmp.lt.s32.totalorder %v1166, %v1170
      %v1301 = vsel %vm1300, %v1166, %v1170
      %vm1302 = vcmp.lt.s32.totalorder %v1299, %v1172
      %v1303 = vsel %vm1302, %v1299, %v1172
      %vm1304 = vcmp.lt.s32.totalorder %v1301, %v1174
      %v1305 = vsel %vm1304, %v1301, %v1174
      %vm1306 = vcmp.lt.s32.totalorder %v1303, %v1176
      %v1307 = vsel %vm1306, %v1303, %v1176
      %vm1308 = vcmp.lt.s32.totalorder %v1305, %v1178
      %v1309 = vsel %vm1308, %v1305, %v1178
      %vm1310 = vcmp.lt.s32.totalorder %v1307, %v1180
      %v1311 = vsel %vm1310, %v1307, %v1180
      %vm1312 = vcmp.lt.s32.totalorder %v1309, %v1182
      %v1313 = vsel %vm1312, %v1309, %v1182
      %vm1314 = vcmp.lt.s32.totalorder %v1311, %v1184
      %v1315 = vsel %vm1314, %v1311, %v1184
      %vm1316 = vcmp.lt.s32.totalorder %v1313, %v1186
      %v1317 = vsel %vm1316, %v1313, %v1186
      %vm1318 = vcmp.lt.s32.totalorder %v1315, %v1188
      %v1319 = vsel %vm1318, %v1315, %v1188
      %vm1320 = vcmp.lt.s32.totalorder %v1317, %v1190
      %v1321 = vsel %vm1320, %v1317, %v1190
      %vm1322 = vcmp.lt.s32.totalorder %v1319, %v1192
      %v1323 = vsel %vm1322, %v1319, %v1192
      %vm1324 = vcmp.lt.s32.totalorder %v1321, %v1194
      %v1325 = vsel %vm1324, %v1321, %v1194
      %vm1326 = vcmp.lt.s32.totalorder %v1323, %v1196
      %v1327 = vsel %vm1326, %v1323, %v1196
      %vm1328 = vcmp.lt.s32.totalorder %v1325, %v1198
      %v1329 = vsel %vm1328, %v1325, %v1198
      %vm1330 = vcmp.lt.s32.totalorder %v1327, %v1200
      %v1331 = vsel %vm1330, %v1327, %v1200
      %vm1332 = vcmp.lt.s32.totalorder %v1329, %v1202
      %v1333 = vsel %vm1332, %v1329, %v1202
      %vm1334 = vcmp.lt.s32.totalorder %v1331, %v1204
      %v1335 = vsel %vm1334, %v1331, %v1204
      %vm1336 = vcmp.lt.s32.totalorder %v1333, %v1206
      %v1337 = vsel %vm1336, %v1333, %v1206
      %vm1338 = vcmp.lt.s32.totalorder %v1335, %v1208
      %v1339 = vsel %vm1338, %v1335, %v1208
      %vm1340 = vcmp.lt.s32.totalorder %v1337, %v1210
      %v1341 = vsel %vm1340, %v1337, %v1210
      %vm1342 = vcmp.lt.s32.totalorder %v1339, %v1212
      %v1343 = vsel %vm1342, %v1339, %v1212
      %vm1344 = vcmp.lt.s32.totalorder %v1341, %v1214
      %v1345 = vsel %vm1344, %v1341, %v1214
      %vm1346 = vcmp.lt.s32.totalorder %v1343, %v1216
      %v1347 = vsel %vm1346, %v1343, %v1216
      %vm1348 = vcmp.lt.s32.totalorder %v1345, %v1218
      %v1349 = vsel %vm1348, %v1345, %v1218
      %vm1350 = vcmp.lt.s32.totalorder %v1347, %v1220
      %v1351 = vsel %vm1350, %v1347, %v1220
      %vm1352 = vcmp.lt.s32.totalorder %v1349, %v1222
      %v1353 = vsel %vm1352, %v1349, %v1222
      %vm1354 = vcmp.lt.s32.totalorder %v1351, %v1224
      %v1355 = vsel %vm1354, %v1351, %v1224
      %vm1356 = vcmp.lt.s32.totalorder %v1353, %v1226
      %v1357 = vsel %vm1356, %v1353, %v1226
      %vm1358 = vcmp.lt.s32.totalorder %v1355, %v1357
      %v1359 = vsel %vm1358, %v1355, %v1357
      %v1360 = vrot.slane %v1359, 4
      %vm1361 = vcmp.lt.s32.totalorder %v1359, %v1360
      %v1362 = vsel %vm1361, %v1359, %v1360
      %v1363 = vrot.slane %v1362, 2
      %vm1364 = vcmp.lt.s32.totalorder %v1362, %v1363
      %v1365 = vsel %vm1364, %v1362, %v1363
      %v1366 = vrot.slane %v1365, 1
      %vm1367 = vcmp.lt.s32.totalorder %v1365, %v1366
      %v1368 = vsel %vm1367, %v1365, %v1366
      %v1369 = vcombine.low %v1297, %v1368
      %v1371 = vunpack.c.l.s4 1966171168
      %v1372 = vunpack.c.0.s8 %v1371
      %v1373 = vlaneseq
      %v1374 = vshrl.u32 %v1373, 7
      %v1375 = vsub.s32 %v1372, %v1374
      %v1376 = vrot.slane %v1369, %v1375
      %v1378 = vunpack.c.l.s4 1966171168
      %v1379 = vunpack.c.0.s8 %v1378
      %v1380 = vlaneseq
      %v1381 = vshrl.u32 %v1380, 7
      %v1382 = vsub.s32 %v1379, %v1381
      %v1383 = vrot.slane %v1376, %v1382
      %v1384 = vlaneseq
      %vm1385 = vcmp.ge.s32.totalorder %v1384, 0
      %vm1386 = vcmp.lt.s32.totalorder %v1384, 256
      %vm1387 = vmand %vm1385, %vm1386
      %1388 = vst.msk [vmem:[%s313] sm:$0x3] %vm1387, %v1383
      %vm1389 = vcmp.eq.s32.totalorder %v993, %v1297
      %vm1390 = vcmp.eq.s32.totalorder %v993, %v1368
      %vm1391 = vcmp.eq.s32.totalorder %v994, %v1297
      %vm1392 = vcmp.eq.s32.totalorder %v994, %v1368
      %vm1393 = vcmp.eq.s32.totalorder %v995, %v1297
      %vm1394 = vcmp.eq.s32.totalorder %v995, %v1368
      %vm1395 = vcmp.eq.s32.totalorder %v996, %v1297
      %vm1396 = vcmp.eq.s32.totalorder %v996, %v1368
      %vm1397 = vcmp.eq.s32.totalorder %v997, %v1297
      %vm1398 = vcmp.eq.s32.totalorder %v997, %v1368
      %vm1399 = vcmp.eq.s32.totalorder %v998, %v1297
      %vm1400 = vcmp.eq.s32.totalorder %v998, %v1368
      %vm1401 = vcmp.eq.s32.totalorder %v999, %v1297
      %vm1402 = vcmp.eq.s32.totalorder %v999, %v1368
      %vm1403 = vcmp.eq.s32.totalorder %v1000, %v1297
      %vm1404 = vcmp.eq.s32.totalorder %v1000, %v1368
      %vm1405 = vcmp.eq.s32.totalorder %v1001, %v1297
      %vm1406 = vcmp.eq.s32.totalorder %v1001, %v1368
      %vm1407 = vcmp.eq.s32.totalorder %v1002, %v1297
      %vm1408 = vcmp.eq.s32.totalorder %v1002, %v1368
      %vm1409 = vcmp.eq.s32.totalorder %v1003, %v1297
      %vm1410 = vcmp.eq.s32.totalorder %v1003, %v1368
      %vm1411 = vcmp.eq.s32.totalorder %v1004, %v1297
      %vm1412 = vcmp.eq.s32.totalorder %v1004, %v1368
      %vm1413 = vcmp.eq.s32.totalorder %v1005, %v1297
      %vm1414 = vcmp.eq.s32.totalorder %v1005, %v1368
      %vm1415 = vcmp.eq.s32.totalorder %v1006, %v1297
      %vm1416 = vcmp.eq.s32.totalorder %v1006, %v1368
      %vm1417 = vcmp.eq.s32.totalorder %v1007, %v1297
      %vm1418 = vcmp.eq.s32.totalorder %v1007, %v1368
      %vm1419 = vcmp.eq.s32.totalorder %v1008, %v1297
      %vm1420 = vcmp.eq.s32.totalorder %v1008, %v1368
      %vm1421 = vcmp.eq.s32.totalorder %v1009, %v1297
      %vm1422 = vcmp.eq.s32.totalorder %v1009, %v1368
      %vm1423 = vcmp.eq.s32.totalorder %v1010, %v1297
      %vm1424 = vcmp.eq.s32.totalorder %v1010, %v1368
      %vm1425 = vcmp.eq.s32.totalorder %v1011, %v1297
      %vm1426 = vcmp.eq.s32.totalorder %v1011, %v1368
      %vm1427 = vcmp.eq.s32.totalorder %v1012, %v1297
      %vm1428 = vcmp.eq.s32.totalorder %v1012, %v1368
      %vm1429 = vcmp.eq.s32.totalorder %v1013, %v1297
      %vm1430 = vcmp.eq.s32.totalorder %v1013, %v1368
      %vm1431 = vcmp.eq.s32.totalorder %v1014, %v1297
      %vm1432 = vcmp.eq.s32.totalorder %v1014, %v1368
      %vm1433 = vcmp.eq.s32.totalorder %v1015, %v1297
      %vm1434 = vcmp.eq.s32.totalorder %v1015, %v1368
      %vm1435 = vcmp.eq.s32.totalorder %v1016, %v1297
      %vm1436 = vcmp.eq.s32.totalorder %v1016, %v1368
      %vm1437 = vcmp.eq.s32.totalorder %v1017, %v1297
      %vm1438 = vcmp.eq.s32.totalorder %v1017, %v1368
      %vm1439 = vcmp.eq.s32.totalorder %v1018, %v1297
      %vm1440 = vcmp.eq.s32.totalorder %v1018, %v1368
      %vm1441 = vcmp.eq.s32.totalorder %v1019, %v1297
      %vm1442 = vcmp.eq.s32.totalorder %v1019, %v1368
      %vm1443 = vcmp.eq.s32.totalorder %v1020, %v1297
      %vm1444 = vcmp.eq.s32.totalorder %v1020, %v1368
      %vm1445 = vcmp.eq.s32.totalorder %v1021, %v1297
      %vm1446 = vcmp.eq.s32.totalorder %v1021, %v1368
      %vm1447 = vcmp.eq.s32.totalorder %v1022, %v1297
      %vm1448 = vcmp.eq.s32.totalorder %v1022, %v1368
      %vm1449 = vcmp.eq.s32.totalorder %v1023, %v1297
      %vm1450 = vcmp.eq.s32.totalorder %v1023, %v1368
      %vm1451 = vcmp.eq.s32.totalorder %v1024, %v1297
      %vm1452 = vcmp.eq.s32.totalorder %v1024, %v1368
      %v1453 = vsel %vm1389, 1, 0
      %v1454 = vsel %vm1390, 1, 0
      %v1455 = vsel %vm1391, 1, 0
      %v1456 = vsel %vm1392, 1, 0
      %v1457 = vsel %vm1393, 1, 0
      %v1458 = vsel %vm1394, 1, 0
      %v1459 = vsel %vm1395, 1, 0
      %v1460 = vsel %vm1396, 1, 0
      %v1461 = vsel %vm1397, 1, 0
      %v1462 = vsel %vm1398, 1, 0
      %v1463 = vsel %vm1399, 1, 0
      %v1464 = vsel %vm1400, 1, 0
      %v1465 = vsel %vm1401, 1, 0
      %v1466 = vsel %vm1402, 1, 0
      %v1467 = vsel %vm1403, 1, 0
      %v1468 = vsel %vm1404, 1, 0
      %v1469 = vsel %vm1405, 1, 0
      %v1470 = vsel %vm1406, 1, 0
      %v1471 = vsel %vm1407, 1, 0
      %v1472 = vsel %vm1408, 1, 0
      %v1473 = vsel %vm1409, 1, 0
      %v1474 = vsel %vm1410, 1, 0
      %v1475 = vsel %vm1411, 1, 0
      %v1476 = vsel %vm1412, 1, 0
      %v1477 = vsel %vm1413, 1, 0
      %v1478 = vsel %vm1414, 1, 0
      %v1479 = vsel %vm1415, 1, 0
      %v1480 = vsel %vm1416, 1, 0
      %v1481 = vsel %vm1417, 1, 0
      %v1482 = vsel %vm1418, 1, 0
      %v1483 = vsel %vm1419, 1, 0
      %v1484 = vsel %vm1420, 1, 0
      %v1485 = vsel %vm1421, 1, 0
      %v1486 = vsel %vm1422, 1, 0
      %v1487 = vsel %vm1423, 1, 0
      %v1488 = vsel %vm1424, 1, 0
      %v1489 = vsel %vm1425, 1, 0
      %v1490 = vsel %vm1426, 1, 0
      %v1491 = vsel %vm1427, 1, 0
      %v1492 = vsel %vm1428, 1, 0
      %v1493 = vsel %vm1429, 1, 0
      %v1494 = vsel %vm1430, 1, 0
      %v1495 = vsel %vm1431, 1, 0
      %v1496 = vsel %vm1432, 1, 0
      %v1497 = vsel %vm1433, 1, 0
      %v1498 = vsel %vm1434, 1, 0
      %v1499 = vsel %vm1435, 1, 0
      %v1500 = vsel %vm1436, 1, 0
      %v1501 = vsel %vm1437, 1, 0
      %v1502 = vsel %vm1438, 1, 0
      %v1503 = vsel %vm1439, 1, 0
      %v1504 = vsel %vm1440, 1, 0
      %v1505 = vsel %vm1441, 1, 0
      %v1506 = vsel %vm1442, 1, 0
      %v1507 = vsel %vm1443, 1, 0
      %v1508 = vsel %vm1444, 1, 0
      %v1509 = vsel %vm1445, 1, 0
      %v1510 = vsel %vm1446, 1, 0
      %v1511 = vsel %vm1447, 1, 0
      %v1512 = vsel %vm1448, 1, 0
      %v1513 = vsel %vm1449, 1, 0
      %v1514 = vsel %vm1450, 1, 0
      %v1515 = vsel %vm1451, 1, 0
      %v1516 = vsel %vm1452, 1, 0
      %v1517 = vcvt.s32.f32 %v1453
      %v1518 = vcvt.s32.f32 %v1454
      %v1519 = vcvt.s32.f32 %v1455
      %v1520 = vcvt.s32.f32 %v1456
      %v1521 = vcvt.s32.f32 %v1457
      %v1522 = vcvt.s32.f32 %v1458
      %v1523 = vcvt.s32.f32 %v1459
      %v1524 = vcvt.s32.f32 %v1460
      %v1525 = vcvt.s32.f32 %v1461
      %v1526 = vcvt.s32.f32 %v1462
      %v1527 = vcvt.s32.f32 %v1463
      %v1528 = vcvt.s32.f32 %v1464
      %v1529 = vcvt.s32.f32 %v1465
      %v1530 = vcvt.s32.f32 %v1466
      %v1531 = vcvt.s32.f32 %v1467
      %v1532 = vcvt.s32.f32 %v1468
      %v1533 = vcvt.s32.f32 %v1469
      %v1534 = vcvt.s32.f32 %v1470
      %v1535 = vcvt.s32.f32 %v1471
      %v1536 = vcvt.s32.f32 %v1472
      %v1537 = vcvt.s32.f32 %v1473
      %v1538 = vcvt.s32.f32 %v1474
      %v1539 = vcvt.s32.f32 %v1475
      %v1540 = vcvt.s32.f32 %v1476
      %v1541 = vcvt.s32.f32 %v1477
      %v1542 = vcvt.s32.f32 %v1478
      %v1543 = vcvt.s32.f32 %v1479
      %v1544 = vcvt.s32.f32 %v1480
      %v1545 = vcvt.s32.f32 %v1481
      %v1546 = vcvt.s32.f32 %v1482
      %v1547 = vcvt.s32.f32 %v1483
      %v1548 = vcvt.s32.f32 %v1484
      %v1549 = vcvt.s32.f32 %v1485
      %v1550 = vcvt.s32.f32 %v1486
      %v1551 = vcvt.s32.f32 %v1487
      %v1552 = vcvt.s32.f32 %v1488
      %v1553 = vcvt.s32.f32 %v1489
      %v1554 = vcvt.s32.f32 %v1490
      %v1555 = vcvt.s32.f32 %v1491
      %v1556 = vcvt.s32.f32 %v1492
      %v1557 = vcvt.s32.f32 %v1493
      %v1558 = vcvt.s32.f32 %v1494
      %v1559 = vcvt.s32.f32 %v1495
      %v1560 = vcvt.s32.f32 %v1496
      %v1561 = vcvt.s32.f32 %v1497
      %v1562 = vcvt.s32.f32 %v1498
      %v1563 = vcvt.s32.f32 %v1499
      %v1564 = vcvt.s32.f32 %v1500
      %v1565 = vcvt.s32.f32 %v1501
      %v1566 = vcvt.s32.f32 %v1502
      %v1567 = vcvt.s32.f32 %v1503
      %v1568 = vcvt.s32.f32 %v1504
      %v1569 = vcvt.s32.f32 %v1505
      %v1570 = vcvt.s32.f32 %v1506
      %v1571 = vcvt.s32.f32 %v1507
      %v1572 = vcvt.s32.f32 %v1508
      %v1573 = vcvt.s32.f32 %v1509
      %v1574 = vcvt.s32.f32 %v1510
      %v1575 = vcvt.s32.f32 %v1511
      %v1576 = vcvt.s32.f32 %v1512
      %v1577 = vcvt.s32.f32 %v1513
      %v1578 = vcvt.s32.f32 %v1514
      %v1579 = vcvt.s32.f32 %v1515
      %v1580 = vcvt.s32.f32 %v1516
      %v1581 = vld [vmem:[%s2] sm:$0xff]
      %v1582 = vld [vmem:[%s2 + $0x8] sm:$0xff]
      %v1583 = vld [vmem:[%s2 + $0x10] sm:$0xff]
      %v1584 = vld [vmem:[%s2 + $0x18] sm:$0xff]
      %v1585 = vld [vmem:[%s2 + $0x20] sm:$0xff]
      %v1586 = vld [vmem:[%s2 + $0x28] sm:$0xff]
      %v1587 = vld [vmem:[%s2 + $0x30] sm:$0xff]
      %v1588 = vld [vmem:[%s2 + $0x38] sm:$0xff]
      %v1589 = vld [vmem:[%s2 + $0x40] sm:$0xff]
      %v1590 = vld [vmem:[%s2 + $0x48] sm:$0xff]
      %v1591 = vld [vmem:[%s2 + $0x50] sm:$0xff]
      %v1592 = vld [vmem:[%s2 + $0x58] sm:$0xff]
      %v1593 = vld [vmem:[%s2 + $0x60] sm:$0xff]
      %v1594 = vld [vmem:[%s2 + $0x68] sm:$0xff]
      %v1595 = vld [vmem:[%s2 + $0x70] sm:$0xff]
      %v1596 = vld [vmem:[%s2 + $0x78] sm:$0xff]
      %1597 = vmatprep.subr.mxu0 %v1518
      %1598 = vmatpush1.msra.mxu0 %v1517
      %1599 = vmatprep.subr.mxu0 %v1520
      %1600 = vmatpush1.msra.mxu0 %v1519
      %1601 = vmatprep.subr.mxu0 %v1522
      %1602 = vmatpush1.msra.mxu0 %v1521
      %1603 = vmatprep.subr.mxu0 %v1524
      %1604 = vmatpush1.msra.mxu0 %v1523
      %1605 = vmatprep.subr.mxu0 %v1526
      %1606 = vmatpush1.msra.mxu0 %v1525
      %1607 = vmatprep.subr.mxu0 %v1528
      %1608 = vmatpush1.msra.mxu0 %v1527
      %1609 = vmatprep.subr.mxu0 %v1530
      %1610 = vmatpush1.msra.mxu0 %v1529
      %1611 = vmatprep.subr.mxu0 %v1532
      %1612 = vmatpush1.msra.mxu0 %v1531
      %1613 = vmatprep.subr.mxu0 %v1534
      %1614 = vmatpush1.msra.mxu0 %v1533
      %1615 = vmatprep.subr.mxu0 %v1536
      %1616 = vmatpush1.msra.mxu0 %v1535
      %1617 = vmatprep.subr.mxu0 %v1538
      %1618 = vmatpush1.msra.mxu0 %v1537
      %1619 = vmatprep.subr.mxu0 %v1540
      %1620 = vmatpush1.msra.mxu0 %v1539
      %1621 = vmatprep.subr.mxu0 %v1542
      %1622 = vmatpush1.msra.mxu0 %v1541
      %1623 = vmatprep.subr.mxu0 %v1544
      %1624 = vmatpush1.msra.mxu0 %v1543
      %1625 = vmatprep.subr.mxu0 %v1546
      %1626 = vmatpush1.msra.mxu0 %v1545
      %1627 = vmatprep.subr.mxu0 %v1548
      %1628 = vmatpush1.msra.mxu0 %v1547
      %1629 = vmatprep.subr.mxu0 %v1550
      %1630 = vmatpush1.msra.mxu0 %v1549
      %1631 = vmatprep.subr.mxu0 %v1552
      %1632 = vmatpush1.msra.mxu0 %v1551
      %1633 = vmatprep.subr.mxu0 %v1554
      %1634 = vmatpush1.msra.mxu0 %v1553
      %1635 = vmatprep.subr.mxu0 %v1556
      %1636 = vmatpush1.msra.mxu0 %v1555
      %1637 = vmatprep.subr.mxu0 %v1558
      %1638 = vmatpush1.msra.mxu0 %v1557
      %1639 = vmatprep.subr.mxu0 %v1560
      %1640 = vmatpush1.msra.mxu0 %v1559
      %1641 = vmatprep.subr.mxu0 %v1562
      %1642 = vmatpush1.msra.mxu0 %v1561
      %1643 = vmatprep.subr.mxu0 %v1564
      %1644 = vmatpush1.msra.mxu0 %v1563
      %1645 = vmatprep.subr.mxu0 %v1566
      %1646 = vmatpush1.msra.mxu0 %v1565
      %1647 = vmatprep.subr.mxu0 %v1568
      %1648 = vmatpush1.msra.mxu0 %v1567
      %1649 = vmatprep.subr.mxu0 %v1570
      %1650 = vmatpush1.msra.mxu0 %v1569
      %1651 = vmatprep.subr.mxu0 %v1572
      %1652 = vmatpush1.msra.mxu0 %v1571
      %1653 = vmatprep.subr.mxu0 %v1574
      %1654 = vmatpush1.msra.mxu0 %v1573
      %1655 = vmatprep.subr.mxu0 %v1576
      %1656 = vmatpush1.msra.mxu0 %v1575
      %1657 = vmatprep.subr.mxu0 %v1578
      %1658 = vmatpush1.msra.mxu0 %v1577
      %1659 = vmatprep.subr.mxu0 %v1580
      %1660 = vmatpush1.msra.mxu0 %v1579
      %1661 = vmatprep.mubr.f32.mxu0 %v1582
      %1662 = vmatmul.mubr.f32.gmra.mrb[0].mxu0 %v1581
      %v1663 = vpop.f32.mrb[0].mxu0
      %v1664 = vadd.f32 0.0, %v1663
      %v1665 = vpop.f32.mrb[0].mxu0
      %v1666 = vadd.f32 0.0, %v1665
      %1667 = vmatprep.mubr.f32.mxu0 %v1584
      %1668 = vmatmul.mubr.f32.gmra.mrb[0].mxu0 %v1583
      %v1669 = vpop.f32.mrb[0].mxu0
      %v1670 = vadd.f32 0.0, %v1669
      %v1671 = vpop.f32.mrb[0].mxu0
      %v1672 = vadd.f32 0.0, %v1671
      %1673 = vmatprep.mubr.f32.mxu0 %v1586
      %1674 = vmatmul.mubr.f32.gmra.mrb[0].mxu0 %v1585
      %v1675 = vpop.f32.mrb[0].mxu0
      %v1676 = vadd.f32 0.0, %v1675
      %v1677 = vpop.f32.mrb[0].mxu0
      %v1678 = vadd.f32 0.0, %v1677
      %1679 = vmatprep.mubr.f32.mxu0 %v1588
      %1680 = vmatmul.mubr.f32.gmra.mrb[0].mxu0 %v1587
      %v1681 = vpop.f32.mrb[0].mxu0
      %v1682 = vadd.f32 0.0, %v1681
      %v1683 = vpop.f32.mrb[0].mxu0
      %v1684 = vadd.f32 0.0, %v1683
      %1685 = vmatprep.mubr.f32.mxu0 %v1590
      %1686 = vmatmul.mubr.f32.gmra.mrb[0].mxu0 %v1589
      %v1687 = vpop.f32.mrb[0].mxu0
      %v1688 = vadd.f32 0.0, %v1687
      %v1689 = vpop.f32.mrb[0].mxu0
      %v1690 = vadd.f32 0.0, %v1689
      %1691 = vmatprep.mubr.f32.mxu0 %v1592
      %1692 = vmatmul.mubr.f32.gmra.mrb[0].mxu0 %v1591
      %v1693 = vpop.f32.mrb[0].mxu0
      %v1694 = vadd.f32 0.0, %v1693
      %v1695 = vpop.f32.mrb[0].mxu0
      %v1696 = vadd.f32 0.0, %v1695
      %1697 = vmatprep.mubr.f32.mxu0 %v1594
      %1698 = vmatmul.mubr.f32.gmra.mrb[0].mxu0 %v1593
      %v1699 = vpop.f32.mrb[0].mxu0
      %v1700 = vadd.f32 0.0, %v1699
      %v1701 = vpop.f32.mrb[0].mxu0
      %v1702 = vadd.f32 0.0, %v1701
      %1703 = vmatprep.mubr.f32.mxu0 %v1596
      %1704 = vmatmul.mubr.f32.gmra.mrb[0].mxu0 %v1595
      %v1705 = vpop.f32.mrb[0].mxu0
      %v1706 = vadd.f32 0.0, %v1705
      %v1707 = vpop.f32.mrb[0].mxu0
      %v1708 = vadd.f32 0.0, %v1707
      %1709 = vdwg.mxu0
      %1710 = vst [vmem:[%s323] sm:$0xff] %v1664
      %1711 = vst [vmem:[%s323 + $0x8] sm:$0xff] %v1666
      %1712 = vst [vmem:[%s323 + $0x10] sm:$0xff] %v1670
      %1713 = vst [vmem:[%s323 + $0x18] sm:$0xff] %v1672
      %1714 = vst [vmem:[%s323 + $0x20] sm:$0xff] %v1676
      %1715 = vst [vmem:[%s323 + $0x28] sm:$0xff] %v1678
      %1716 = vst [vmem:[%s323 + $0x30] sm:$0xff] %v1682
      %1717 = vst [vmem:[%s323 + $0x38] sm:$0xff] %v1684
      %1718 = vst [vmem:[%s323 + $0x40] sm:$0xff] %v1688
      %1719 = vst [vmem:[%s323 + $0x48] sm:$0xff] %v1690
      %1720 = vst [vmem:[%s323 + $0x50] sm:$0xff] %v1694
      %1721 = vst [vmem:[%s323 + $0x58] sm:$0xff] %v1696
      %1722 = vst [vmem:[%s323 + $0x60] sm:$0xff] %v1700
      %1723 = vst [vmem:[%s323 + $0x68] sm:$0xff] %v1702
      %1724 = vst [vmem:[%s323 + $0x70] sm:$0xff] %v1706
      %1725 = vst [vmem:[%s323 + $0x78] sm:$0xff] %v1708
      %v1726 = vsub.f32 %v334, %v1664
      %v1727 = vsub.f32 %v335, %v1666
      %v1728 = vsub.f32 %v336, %v1670
      %v1729 = vsub.f32 %v337, %v1672
      %v1730 = vsub.f32 %v338, %v1676
      %v1731 = vsub.f32 %v339, %v1678
      %v1732 = vsub.f32 %v340, %v1682
      %v1733 = vsub.f32 %v341, %v1684
      %v1734 = vsub.f32 %v342, %v1688
      %v1735 = vsub.f32 %v343, %v1690
      %v1736 = vsub.f32 %v344, %v1694
      %v1737 = vsub.f32 %v345, %v1696
      %v1738 = vsub.f32 %v346, %v1700
      %v1739 = vsub.f32 %v347, %v1702
      %v1740 = vsub.f32 %v348, %v1706
      %v1741 = vsub.f32 %v349, %v1708
      %v1742 = vmul.f32 %v1726, %v1726
      %v1743 = vmul.f32 %v1727, %v1727
      %v1744 = vmul.f32 %v1728, %v1728
      %v1745 = vmul.f32 %v1729, %v1729
      %v1746 = vmul.f32 %v1730, %v1730
      %v1747 = vmul.f32 %v1731, %v1731
      %v1748 = vmul.f32 %v1732, %v1732
      %v1749 = vmul.f32 %v1733, %v1733
      %v1750 = vmul.f32 %v1734, %v1734
      %v1751 = vmul.f32 %v1735, %v1735
      %v1752 = vmul.f32 %v1736, %v1736
      %v1753 = vmul.f32 %v1737, %v1737
      %v1754 = vmul.f32 %v1738, %v1738
      %v1755 = vmul.f32 %v1739, %v1739
      %v1756 = vmul.f32 %v1740, %v1740
      %v1757 = vmul.f32 %v1741, %v1741
      %v1758 = vadd.f32 %v1742, %v1744
      %v1759 = vadd.f32 %v1758, %v1746
      %v1760 = vadd.f32 %v1759, %v1748
      %v1761 = vadd.f32 %v1760, %v1750
      %v1762 = vadd.f32 %v1761, %v1752
      %v1763 = vadd.f32 %v1762, %v1754
      %v1764 = vadd.f32 %v1763, %v1756
      %v1765 = vrot.slane %v1764, 4
      %v1766 = vadd.f32 %v1764, %v1765
      %v1767 = vrot.slane %v1766, 2
      %v1768 = vadd.f32 %v1766, %v1767
      %v1769 = vrot.slane %v1768, 1
      %v1770 = vadd.f32 %v1768, %v1769
      %v1771 = vadd.f32 %v1743, %v1745
      %v1772 = vadd.f32 %v1771, %v1747
      %v1773 = vadd.f32 %v1772, %v1749
      %v1774 = vadd.f32 %v1773, %v1751
      %v1775 = vadd.f32 %v1774, %v1753
      %v1776 = vadd.f32 %v1775, %v1755
      %v1777 = vadd.f32 %v1776, %v1757
      %v1778 = vrot.slane %v1777, 4
      %v1779 = vadd.f32 %v1777, %v1778
      %v1780 = vrot.slane %v1779, 2
      %v1781 = vadd.f32 %v1779, %v1780
      %v1782 = vrot.slane %v1781, 1
      %v1783 = vadd.f32 %v1781, %v1782
      %v1786 = vcombine.low %v1770, %v1783
      %v1788 = vunpack.c.l.s4 1966171168
      %v1789 = vunpack.c.0.s8 %v1788
      %v1790 = vlaneseq
      %v1791 = vshrl.u32 %v1790, 7
      %v1792 = vsub.s32 %v1789, %v1791
      %v1793 = vrot.slane %v1786, %v1792
      %v1795 = vunpack.c.l.s4 1966171168
      %v1796 = vunpack.c.0.s8 %v1795
      %v1797 = vlaneseq
      %v1798 = vshrl.u32 %v1797, 7
      %v1799 = vsub.s32 %v1796, %v1798
      %v1800 = vrot.slane %v1793, %v1799
      %1802 = vst.msk [vmem:[%s332] sm:$0x3] %vm1387, %v1800
      %s1803 = smul.u32 2, %s23
      %p1804 = scmp.lt.s32.totalorder %s22, 1
      %s1805 = scalar_select %p1804, %s22, 1
      %p1806 = scmp.lt.s32.totalorder %s1803, 1
      %s1807 = scalar_select %p1806, %s1803, 1
      %s1808 = smul.addr %s1805, 2
      %s1809 = sadd.s32 %s1807, %s1808
      %s1810 = scalar_lea.vmem %s4, %s1809
      %s1811 = smul.u32 2, %s23
      %p1812 = scmp.lt.s32.totalorder %s22, 1
      %s1813 = scalar_select %p1812, %s22, 1
      %p1814 = scmp.lt.s32.totalorder %s1811, 1
      %s1815 = scalar_select %p1814, %s1811, 1
      %s1816 = smul.addr %s1813, 16
      %s1817 = sadd.s32 %s1815, %s1816
      %s1818 = smul.addr %s1817, 8
      %s1819 = scalar_lea.vmem %s5, %s1818
      %s1820 = smul.u32 2, %s23
      %p1821 = scmp.lt.s32.totalorder %s22, 1
      %s1822 = scalar_select %p1821, %s22, 1
      %p1823 = scmp.lt.s32.totalorder %s1820, 1
      %s1824 = scalar_select %p1823, %s1820, 1
      %s1825 = smul.addr %s1822, 2
      %s1826 = sadd.s32 %s1824, %s1825
      %s1827 = scalar_lea.vmem %s6, %s1826
      // Predicated region
      $region37: #{vector_quantizer_ema_forward.1} parent=35 // pred_check
        %p1828 = pneg %p141
      $region38: #{vector_quantizer_ema_forward.1} parent=35 // pred_check_branch
        %1830 = sbr.rel (%p1828) target = $region40
      $region39: #{vector_quantizer_ema_forward.1} parent=35 // pred_region
        %s1831 = smul.u32 2, %s23
      $region40: #{vector_quantizer_ema_forward.1} parent=35 // pred_fallthru
        _
      // Predicated region
      $region41: #{vector_quantizer_ema_forward.1} parent=35 // pred_check
        %p1832 = pneg %p169
      $region42: #{vector_quantizer_ema_forward.1} parent=35 // pred_check_branch
        %1834 = sbr.rel (%p1832) target = $region44
      $region43: #{vector_quantizer_ema_forward.1} parent=35 // pred_region
        %s1835 = smul.u32 2, %s23
      $region44: #{vector_quantizer_ema_forward.1} parent=35 // pred_fallthru
        _
      // Predicated region
      $region45: #{vector_quantizer_ema_forward.1} parent=35 // pred_check
        %p1836 = pneg %p197
      $region46: #{vector_quantizer_ema_forward.1} parent=35 // pred_check_branch
        %1838 = sbr.rel (%p1836) target = $region48
      $region47: #{vector_quantizer_ema_forward.1} parent=35 // pred_region
        %s1839 = smul.u32 2, %s23
      $region48: #{vector_quantizer_ema_forward.1} parent=35 // pred_fallthru
        _
    $region36: #{vector_quantizer_ema_forward.1} parent=5 // pred_fallthru
      _
    %p1840 = scmp.le.s32.totalorder 2, %s13
    // Predicated region
    $region49: #{vector_quantizer_ema_forward.1} parent=5 // pred_check
      %p1841 = pneg %p1840
    $region50: #{vector_quantizer_ema_forward.1} parent=5 // pred_check_branch
      %1843 = sbr.rel (%p1841) target = $region52
    $region51: #{vector_quantizer_ema_forward.1} parent=5 // pred_region
      %s1844 = ssub.s32 %s13, 2
      // Predicated region
      $region53: #{vector_quantizer_ema_forward.1} parent=51 // pred_check
        %p1845 = pneg %p147
      $region54: #{vector_quantizer_ema_forward.1} parent=51 // pred_check_branch
        %1847 = sbr.rel (%p1845) target = $region56
      $region55: #{vector_quantizer_ema_forward.1} parent=51 // pred_region
        %s1848 = smul.u32 2, %s25
        %p1849 = scmp.lt.s32.totalorder %s24, 1
        %s1850 = scalar_select %p1849, %s24, 1
        %p1851 = scmp.lt.s32.totalorder %s1848, 1
        %s1852 = scalar_select %p1851, %s1848, 1
        %s1853 = smul.addr %s1850, 2
        %s1854 = sadd.s32 %s1852, %s1853
        %s1855 = scalar_lea.vmem %s4, %s1854
      $region56: #{vector_quantizer_ema_forward.1} parent=51 // pred_fallthru
        _
      // Predicated region
      $region57: #{vector_quantizer_ema_forward.1} parent=51 // pred_check
        %p1856 = pneg %p175
      $region58: #{vector_quantizer_ema_forward.1} parent=51 // pred_check_branch
        %1858 = sbr.rel (%p1856) target = $region60
      $region59: #{vector_quantizer_ema_forward.1} parent=51 // pred_region
        %s1859 = smul.u32 2, %s25
        %p1860 = scmp.lt.s32.totalorder %s24, 1
        %s1861 = scalar_select %p1860, %s24, 1
        %p1862 = scmp.lt.s32.totalorder %s1859, 1
        %s1863 = scalar_select %p1862, %s1859, 1
        %s1864 = smul.addr %s1861, 16
        %s1865 = sadd.s32 %s1863, %s1864
        %s1866 = smul.addr %s1865, 8
        %s1867 = scalar_lea.vmem %s5, %s1866
      $region60: #{vector_quantizer_ema_forward.1} parent=51 // pred_fallthru
        _
      // Predicated region
      $region61: #{vector_quantizer_ema_forward.1} parent=51 // pred_check
        %p1868 = pneg %p203
      $region62: #{vector_quantizer_ema_forward.1} parent=51 // pred_check_branch
        %1870 = sbr.rel (%p1868) target = $region64
      $region63: #{vector_quantizer_ema_forward.1} parent=51 // pred_region
        %s1871 = smul.u32 2, %s25
        %p1872 = scmp.lt.s32.totalorder %s24, 1
        %s1873 = scalar_select %p1872, %s24, 1
        %p1874 = scmp.lt.s32.totalorder %s1871, 1
        %s1875 = scalar_select %p1874, %s1871, 1
        %s1876 = smul.addr %s1873, 2
        %s1877 = sadd.s32 %s1875, %s1876
        %s1878 = scalar_lea.vmem %s6, %s1877
      $region64: #{vector_quantizer_ema_forward.1} parent=51 // pred_fallthru
        _
    $region52: #{vector_quantizer_ema_forward.1} parent=5 // pred_fallthru
      _
  $region6: #{vector_quantizer_ema_forward.1} parent=0 // loop_footer
    %s17 = sadd.s32 1, %s13
  $region7: #{vector_quantizer_ema_forward.1} parent=0 // loop_footer_branch
    %12 = sbr.rel target = $region3
  $region8: #{vector_quantizer_ema_forward.1} parent=0 // loop_exit
    _

</llo_original>
